<compile_context>
chip_gen: v7x
topology: tpu7x:2x2x1
jax: 0.10.0
libtpu: 0.0.40
codegen_flags: <defaults>
</compile_context>

<pallas_src>
import functools

import jax
import jax.numpy as jnp
from jax.experimental import pallas as pl
from jax.experimental.pallas import tpu as pltpu

IN_FEATURES = 28 * 28   # 784
H1 = 512
H2 = 256
OUT_RAW = 10
OUT_PAD = 128           # lane-aligned class dim; padded lanes masked via b3
NEG_MASK = -1e9         # finite large-negative mask baked into padded b3 lanes


def _round_up(x, m):
    return ((x + m - 1) // m) * m


def _sigmoid_via_tanh(x):
    # sigmoid(x) = 0.5 * tanh(0.5 * x) + 0.5  -> a single EUP transcendental.
    half = jnp.asarray(0.5, dtype=x.dtype)
    return half * jnp.tanh(half * x) + half


def mlp_kernel(x_ref, w1_ref, b1_ref, w2_ref, b2_ref, w3_ref, b3_ref, o_ref):
    # x tile: (TM, 784) bf16; weights resident bf16; biases f32; MXU acc f32.
    x = x_ref[...]

    # --- fc1 + sigmoid (activation in bf16 on the EUP) ---
    h1 = jnp.dot(x, w1_ref[...], preferred_element_type=jnp.float32) + b1_ref[...]
    h1 = _sigmoid_via_tanh(h1.astype(jnp.bfloat16))

    # --- fc2 + sigmoid ---
    h2 = jnp.dot(h1, w2_ref[...], preferred_element_type=jnp.float32) + b2_ref[...]
    h2 = _sigmoid_via_tanh(h2.astype(jnp.bfloat16))

    # --- fc3 logits on a full 128-lane tile ---
    # Padded class lanes (>= 10) receive -1e9 through the padded f32 bias, so
    # no in-kernel iota/where mask is needed; they contribute 0 to the
    # log_softmax denominator and never win the max.
    logits = jnp.dot(h2, w3_ref[...], preferred_element_type=jnp.float32) + b3_ref[...]

    # --- numerically stable log_softmax over the class axis ---
    m = jnp.max(logits, axis=1, keepdims=True)
    shifted = logits - m
    lse = jnp.log(jnp.sum(jnp.exp(shifted), axis=1, keepdims=True))
    o_ref[...] = (shifted - lse).astype(o_ref.dtype)


def prepare_params(raw_params):
    """One-time host-side prep: bf16 weights, f32 biases, class-lane mask in b3."""
    w1, b1, w2, b2, w3, b3 = raw_params
    w1p = w1.astype(jnp.bfloat16)                                   # (784, 512)
    b1p = b1.reshape(1, H1).astype(jnp.float32)
    w2p = w2.astype(jnp.bfloat16)                                   # (512, 256)
    b2p = b2.reshape(1, H2).astype(jnp.float32)
    w3p = jnp.pad(w3, ((0, 0), (0, OUT_PAD - OUT_RAW))).astype(jnp.bfloat16)  # (256, 128)
    b3p = jnp.pad(b3.reshape(1, OUT_RAW).astype(jnp.float32),
                  ((0, 0), (0, OUT_PAD - OUT_RAW)),
                  constant_values=NEG_MASK)                          # (1, 128) f32
    return (w1p, b1p, w2p, b2p, w3p, b3p)


def _choose_tiling(batch, max_tm):
    """Pick (TM, B_pad): TM multiple of 16 (bf16 pack), >=2 tiles when possible
    (v7x megacore), capped at max_tm, with padding waste <= 16 rows per tile."""
    b16 = _round_up(max(batch, 1), 16)
    n_min = 2 if b16 >= 32 else 1
    n_tiles = max(n_min, (b16 + max_tm - 1) // max_tm)
    tm = _round_up((b16 + n_tiles - 1) // n_tiles, 16)
    return tm, n_tiles * tm


@functools.partial(jax.jit, static_argnames=("max_tm",))
def net_forward(x_nchw, prepared_params, max_tm=1024):
    """Forward pass equivalent to Net.forward (input is NCHW, e.g. (B,1,28,28))."""
    w1, b1, w2, b2, w3, b3 = prepared_params
    B = x_nchw.shape[0]

    TM, B_pad = _choose_tiling(B, max_tm)

    # x.view(-1, 784) -> cast to bf16 -> pad batch rows (pads move bf16, not f32).
    x2d = x_nchw.reshape(B, IN_FEATURES).astype(jnp.bfloat16)
    if B_pad != B:
        x2d = jnp.pad(x2d, ((0, B_pad - B), (0, 0)))

    grid = (B_pad // TM,)
    grid_spec = pltpu.PrefetchScalarGridSpec(
        num_scalar_prefetch=0,
        grid=grid,
        in_specs=[
            pl.BlockSpec((TM, IN_FEATURES), lambda i: (i, 0)),   # x: streamed per tile
            pl.BlockSpec((IN_FEATURES, H1), lambda i: (0, 0)),   # w1: resident
            pl.BlockSpec((1, H1), lambda i: (0, 0)),             # b1: resident (f32)
            pl.BlockSpec((H1, H2), lambda i: (0, 0)),            # w2: resident
            pl.BlockSpec((1, H2), lambda i: (0, 0)),             # b2: resident (f32)
            pl.BlockSpec((H2, OUT_PAD), lambda i: (0, 0)),       # w3: resident
            pl.BlockSpec((1, OUT_PAD), lambda i: (0, 0)),        # b3: resident (f32, mask baked in)
        ],
        out_specs=pl.BlockSpec((TM, OUT_PAD), lambda i: (i, 0)),
    )

    # Advisory cost hint for the XLA scheduler around the custom call.
    flops = 2 * B_pad * (IN_FEATURES * H1 + H1 * H2 + H2 * OUT_PAD)
    transcendentals = B_pad * (H1 + H2 + OUT_PAD)          # tanh x2 + exp in softmax
    bytes_accessed = (
        B_pad * IN_FEATURES * 2                                          # x (bf16)
        + (IN_FEATURES * H1 + H1 * H2 + H2 * OUT_PAD) * 2                # weights (bf16)
        + (H1 + H2 + OUT_PAD) * 4                                        # biases (f32)
        + B_pad * OUT_PAD * 4                                            # output (f32)
    )

    out_padded = pl.pallas_call(
        mlp_kernel,
        out_shape=jax.ShapeDtypeStruct((B_pad, OUT_PAD), jnp.float32),
        grid_spec=grid_spec,
        compiler_params=pltpu.CompilerParams(
            dimension_semantics=("parallel",),   # batch tiles shard across v7x's two TCs
        ),
        cost_estimate=pl.CostEstimate(
            flops=flops,
            transcendentals=transcendentals,
            bytes_accessed=bytes_accessed,
        ),
    )(x2d, w1, b1, w2, b2, w3, b3)

    # Drop batch padding and padded class lanes.
    return out_padded[:B, :OUT_RAW]


def init_params(key):
    # Deterministic synthetic parameters; shapes follow the PyTorch module,
    # stored as (in_features, out_features) so the kernel computes x @ W + b.
    k1, k2, k3, k4, k5, k6 = jax.random.split(key, 6)
    w1 = jax.random.normal(k1, (IN_FEATURES, H1), jnp.float32) * 0.02
    b1 = jax.random.normal(k2, (H1,), jnp.float32) * 0.02
    w2 = jax.random.normal(k3, (H1, H2), jnp.float32) * 0.02
    b2 = jax.random.normal(k4, (H2,), jnp.float32) * 0.02
    w3 = jax.random.normal(k5, (H2, OUT_RAW), jnp.float32) * 0.02
    b3 = jax.random.normal(k6, (OUT_RAW,), jnp.float32) * 0.02
    return (w1, b1, w2, b2, w3, b3)


def reference_forward(x_nchw, raw_params):
    """Pure-JAX f32 reference matching the PyTorch module."""
    w1, b1, w2, b2, w3, b3 = raw_params
    x = x_nchw.reshape(x_nchw.shape[0], IN_FEATURES).astype(jnp.float32)
    h1 = jax.nn.sigmoid(x @ w1 + b1)
    h2 = jax.nn.sigmoid(h1 @ w2 + b2)
    logits = h2 @ w3 + b3
    return jax.nn.log_softmax(logits, axis=1)


if __name__ == "__main__":
    key = jax.random.PRNGKey(0)
    kx, kp = jax.random.split(key)
    x = jax.random.normal(kx, (8, 1, 28, 28), jnp.float32)  # NCHW MNIST-like input
    raw_params = init_params(kp)
    params = prepare_params(raw_params)

    out = net_forward(x, params)
    out = jax.block_until_ready(out)

    assert out.shape == (8, OUT_RAW)

    # log_softmax rows must sum to ~1 in probability space.
    row_sums = jnp.exp(out).sum(axis=1)
    assert jnp.allclose(row_sums, 1.0, atol=1e-3), row_sums

    # Compare against the f32 reference (loose tolerance due to bf16 weights/activations).
    ref = reference_forward(x, raw_params)
    assert jnp.max(jnp.abs(out - ref)) < 0.1, jnp.max(jnp.abs(out - ref))

    print("KERNEL_OK")
</pallas_src>

<mosaic_0001>
module attributes {stable_mosaic.version = 11 : i64} {
  func.func @mlp_kernel(%arg0: i32, %arg1: memref<16x784xbf16, #tpu.memory_space<vmem>>, %arg2: memref<784x512xbf16, #tpu.memory_space<vmem>>, %arg3: memref<1x512xf32, #tpu.memory_space<vmem>>, %arg4: memref<512x256xbf16, #tpu.memory_space<vmem>>, %arg5: memref<1x256xf32, #tpu.memory_space<vmem>>, %arg6: memref<256x128xbf16, #tpu.memory_space<vmem>>, %arg7: memref<1x128xf32, #tpu.memory_space<vmem>>, %arg8: memref<16x128xf32, #tpu.memory_space<vmem>>) attributes {dimension_semantics = [#tpu.dimension_semantics<parallel>], iteration_bounds = array<i64: 1>, scalar_prefetch = 0 : i64, scratch_operands = 0 : i64, tpu.core_type = #tpu.core_type<tc>, window_params = [{transform_indices = @transform_0, window_bounds = array<i64: 16, 784>}, {pipeline_mode = #tpu.pipeline_mode<synchronous>, transform_indices = @transform_1, window_bounds = array<i64: 784, 512>}, {pipeline_mode = #tpu.pipeline_mode<synchronous>, transform_indices = @transform_2, window_bounds = array<i64: 1, 512>}, {pipeline_mode = #tpu.pipeline_mode<synchronous>, transform_indices = @transform_3, window_bounds = array<i64: 512, 256>}, {pipeline_mode = #tpu.pipeline_mode<synchronous>, transform_indices = @transform_4, window_bounds = array<i64: 1, 256>}, {pipeline_mode = #tpu.pipeline_mode<synchronous>, transform_indices = @transform_5, window_bounds = array<i64: 256, 128>}, {pipeline_mode = #tpu.pipeline_mode<synchronous>, transform_indices = @transform_6, window_bounds = array<i64: 1, 128>}, {transform_indices = @transform_7, window_bounds = array<i64: 16, 128>}]} {
    %c0 = arith.constant 0 : index
    %c0_0 = arith.constant 0 : index
    %0 = vector.load %arg1[%c0, %c0_0] : memref<16x784xbf16, #tpu.memory_space<vmem>>, vector<16x784xbf16>
    %c0_1 = arith.constant 0 : index
    %c0_2 = arith.constant 0 : index
    %1 = vector.load %arg2[%c0_1, %c0_2] : memref<784x512xbf16, #tpu.memory_space<vmem>>, vector<784x512xbf16>
    %cst = arith.constant dense<0.000000e+00> : vector<16x512xf32>
    %2 = tpu.matmul %0, %1, %cst {dimension_numbers = #tpu.dot_dimension_numbers<[1], [0], [0], [1], [0, 0, 1, 1], [], []>} : vector<16x784xbf16>, vector<784x512xbf16>, vector<16x512xf32> -> vector<16x512xf32>
    %c0_3 = arith.constant 0 : index
    %c0_4 = arith.constant 0 : index
    %3 = vector.load %arg3[%c0_3, %c0_4] : memref<1x512xf32, #tpu.memory_space<vmem>>, vector<1x512xf32>
    %4 = vector.broadcast %3 : vector<1x512xf32> to vector<16x512xf32>
    %5 = arith.addf %2, %4 : vector<16x512xf32>
    %6 = arith.truncf %5 : vector<16x512xf32> to vector<16x512xbf16>
    %cst_5 = arith.constant 5.000000e-01 : bf16
    %7 = vector.broadcast %cst_5 : bf16 to vector<16x512xbf16>
    %8 = arith.mulf %7, %6 : vector<16x512xbf16>
    %9 = math.tanh %8 : vector<16x512xbf16>
    %cst_6 = arith.constant 5.000000e-01 : bf16
    %10 = vector.broadcast %cst_6 : bf16 to vector<16x512xbf16>
    %11 = arith.mulf %10, %9 : vector<16x512xbf16>
    %cst_7 = arith.constant 5.000000e-01 : bf16
    %12 = vector.broadcast %cst_7 : bf16 to vector<16x512xbf16>
    %13 = arith.addf %11, %12 : vector<16x512xbf16>
    %c0_8 = arith.constant 0 : index
    %c0_9 = arith.constant 0 : index
    %14 = vector.load %arg4[%c0_8, %c0_9] : memref<512x256xbf16, #tpu.memory_space<vmem>>, vector<512x256xbf16>
    %cst_10 = arith.constant dense<0.000000e+00> : vector<16x256xf32>
    %15 = tpu.matmul %13, %14, %cst_10 {dimension_numbers = #tpu.dot_dimension_numbers<[1], [0], [0], [1], [0, 0, 1, 1], [], []>} : vector<16x512xbf16>, vector<512x256xbf16>, vector<16x256xf32> -> vector<16x256xf32>
    %c0_11 = arith.constant 0 : index
    %c0_12 = arith.constant 0 : index
    %16 = vector.load %arg5[%c0_11, %c0_12] : memref<1x256xf32, #tpu.memory_space<vmem>>, vector<1x256xf32>
    %17 = vector.broadcast %16 : vector<1x256xf32> to vector<16x256xf32>
    %18 = arith.addf %15, %17 : vector<16x256xf32>
    %19 = arith.truncf %18 : vector<16x256xf32> to vector<16x256xbf16>
    %cst_13 = arith.constant 5.000000e-01 : bf16
    %20 = vector.broadcast %cst_13 : bf16 to vector<16x256xbf16>
    %21 = arith.mulf %20, %19 : vector<16x256xbf16>
    %22 = math.tanh %21 : vector<16x256xbf16>
    %cst_14 = arith.constant 5.000000e-01 : bf16
    %23 = vector.broadcast %cst_14 : bf16 to vector<16x256xbf16>
    %24 = arith.mulf %23, %22 : vector<16x256xbf16>
    %cst_15 = arith.constant 5.000000e-01 : bf16
    %25 = vector.broadcast %cst_15 : bf16 to vector<16x256xbf16>
    %26 = arith.addf %24, %25 : vector<16x256xbf16>
    %c0_16 = arith.constant 0 : index
    %c0_17 = arith.constant 0 : index
    %27 = vector.load %arg6[%c0_16, %c0_17] : memref<256x128xbf16, #tpu.memory_space<vmem>>, vector<256x128xbf16>
    %cst_18 = arith.constant dense<0.000000e+00> : vector<16x128xf32>
    %28 = tpu.matmul %26, %27, %cst_18 {dimension_numbers = #tpu.dot_dimension_numbers<[1], [0], [0], [1], [0, 0, 1, 1], [], []>} : vector<16x256xbf16>, vector<256x128xbf16>, vector<16x128xf32> -> vector<16x128xf32>
    %c0_19 = arith.constant 0 : index
    %c0_20 = arith.constant 0 : index
    %29 = vector.load %arg7[%c0_19, %c0_20] : memref<1x128xf32, #tpu.memory_space<vmem>>, vector<1x128xf32>
    %30 = vector.broadcast %29 : vector<1x128xf32> to vector<16x128xf32>
    %31 = arith.addf %28, %30 : vector<16x128xf32>
    %cst_21 = arith.constant dense<0xFF800000> : vector<16xf32>
    %32 = vector.multi_reduction <maximumf>, %31, %cst_21 [1] : vector<16x128xf32> to vector<16xf32>
    %33 = vector.shape_cast %32 : vector<16xf32> to vector<16x1xf32>
    %34 = vector.broadcast %33 : vector<16x1xf32> to vector<16x128xf32>
    %35 = arith.subf %31, %34 : vector<16x128xf32>
    %36 = math.exp %35 : vector<16x128xf32>
    %cst_22 = arith.constant dense<0.000000e+00> : vector<16xf32>
    %37 = vector.multi_reduction <add>, %36, %cst_22 [1] : vector<16x128xf32> to vector<16xf32>
    %38 = vector.shape_cast %37 : vector<16xf32> to vector<16x1xf32>
    %39 = math.log %38 : vector<16x1xf32>
    %40 = vector.broadcast %39 : vector<16x1xf32> to vector<16x128xf32>
    %41 = arith.subf %35, %40 : vector<16x128xf32>
    %c0_23 = arith.constant 0 : index
    %c0_24 = arith.constant 0 : index
    %42 = vector.load %arg8[%c0_23, %c0_24] : memref<16x128xf32, #tpu.memory_space<vmem>>, vector<16x128xf32>
    tpu.vector_store %arg8[%c0_23, %c0_24], %41 {strides = array<i32>} : memref<16x128xf32, #tpu.memory_space<vmem>>, vector<16x128xf32>,
    return
  }
  func.func @transform_0(%arg0: i32) -> (i32, i32) {
    %c0_i32 = arith.constant 0 : i32
    %c0_i32_0 = arith.constant 0 : i32
    return %arg0, %c0_i32 : i32, i32
  }
  func.func @transform_1(%arg0: i32) -> (i32, i32) {
    %c0_i32 = arith.constant 0 : i32
    %c0_i32_0 = arith.constant 0 : i32
    %c0_i32_1 = arith.constant 0 : i32
    return %c0_i32, %c0_i32_0 : i32, i32
  }
  func.func @transform_2(%arg0: i32) -> (i32, i32) {
    %c0_i32 = arith.constant 0 : i32
    %c0_i32_0 = arith.constant 0 : i32
    %c0_i32_1 = arith.constant 0 : i32
    return %c0_i32, %c0_i32_0 : i32, i32
  }
  func.func @transform_3(%arg0: i32) -> (i32, i32) {
    %c0_i32 = arith.constant 0 : i32
    %c0_i32_0 = arith.constant 0 : i32
    %c0_i32_1 = arith.constant 0 : i32
    return %c0_i32, %c0_i32_0 : i32, i32
  }
  func.func @transform_4(%arg0: i32) -> (i32, i32) {
    %c0_i32 = arith.constant 0 : i32
    %c0_i32_0 = arith.constant 0 : i32
    %c0_i32_1 = arith.constant 0 : i32
    return %c0_i32, %c0_i32_0 : i32, i32
  }
  func.func @transform_5(%arg0: i32) -> (i32, i32) {
    %c0_i32 = arith.constant 0 : i32
    %c0_i32_0 = arith.constant 0 : i32
    %c0_i32_1 = arith.constant 0 : i32
    return %c0_i32, %c0_i32_0 : i32, i32
  }
  func.func @transform_6(%arg0: i32) -> (i32, i32) {
    %c0_i32 = arith.constant 0 : i32
    %c0_i32_0 = arith.constant 0 : i32
    %c0_i32_1 = arith.constant 0 : i32
    return %c0_i32, %c0_i32_0 : i32, i32
  }
  func.func @transform_7(%arg0: i32) -> (i32, i32) {
    %c0_i32 = arith.constant 0 : i32
    %c0_i32_0 = arith.constant 0 : i32
    return %arg0, %c0_i32 : i32, i32
  }
}

</mosaic_0001>

<llo_original>
// kernel: net_forward.1
$region0: #{net_forward.1}
  #allocation0 [shape = 'u32[]', space=smem, size = 0x4, offset = 0x4, fixed_abs, tag = 'smem constant byte address 0x4 - core index']
  #allocation1 [shape = 'u32[144,128]{1,0:T(1,128)}', space=vmem, size = 0x12000, scoped, tag = 'internal scratch']
  %s0 = inlined_call_operand.vmem [shape: bf16[16,784], index: 0, kind: input, shape index: {}]
  %s1 = inlined_call_operand.hbm [shape: bf16[784,512], index: 1, kind: input, shape index: {}]
  %s2 = inlined_call_operand.vmem [shape: f32[1,512], index: 2, kind: input, shape index: {}]
  %s3 = inlined_call_operand.vmem [shape: bf16[512,256], index: 3, kind: input, shape index: {}]
  %s4 = inlined_call_operand.vmem [shape: f32[1,256], index: 4, kind: input, shape index: {}]
  %s5 = inlined_call_operand.hbm [shape: bf16[256,128], index: 5, kind: input, shape index: {}]
  %s6 = inlined_call_operand.vmem [shape: f32[1,128], index: 6, kind: input, shape index: {}]
  %s7 = inlined_call_operand.vmem [shape: f32[16,128], index: 7, kind: output, shape index: {}]
  %s8 = sld [smem:[#allocation0]]
  $region46: #{net_forward.1} parent=0
    _
  %s10 = ssub.s32 1, %s8
  %s11 = scalar_select 0, %s10, %s8
  $region1: #{net_forward.1} parent=0
    #allocation2 [shape = 'u8[802816]{0}', space=vmem, size = 0xc4000, scoped, tag = 'input window, operand 1, single buffered']
    #allocation3 [shape = 's32[1]{0}', space=sflag, size = 0x4, scoped, tag = 'scoped memory for net_forward.1']
    #allocation4 [shape = 'u8[65536]{0}', space=vmem, size = 0x10000, scoped, tag = 'input window, operand 5, single buffered']
    #allocation5 [shape = 's32[1]{0}', space=sflag, size = 0x4, scoped, tag = 'scoped memory for net_forward.1']
    %12 = vsyncpa [#allocation3], 0
    %13 = vsyncpa [#allocation5], 0
    // Predicated region
    $region2: #{net_forward.1} parent=1 // pred_check
      _
    $region3: #{net_forward.1} parent=1 // pred_check_branch
      %15 = sbr.rel (0) target = $region5
    $region4: #{net_forward.1} parent=1 // pred_region
      _
    $region5: #{net_forward.1} parent=1 // pred_fallthru
      _
    // Predicated region
    $region6: #{net_forward.1} parent=1 // pred_check
      _
    $region7: #{net_forward.1} parent=1 // pred_check_branch
      %17 = sbr.rel (0) target = $region9
    $region8: #{net_forward.1} parent=1 // pred_region
      %s19 = ssub.s32 25088, 25088
      %20 = vsyncadd [#allocation3], %s19
      %s21 = sshll.u32 [#allocation2], 4
      %s22 = int_to_ptr.vmem [resolvable:$true] %s21
      %27 = dma.hbm_to_vmem [thread:$0]  %s1, 25088, %s22, [#allocation3], 256, 256, 16
    $region9: #{net_forward.1} parent=1 // pred_fallthru
      _
    // Predicated region
    $region10: #{net_forward.1} parent=1 // pred_check
      _
    $region11: #{net_forward.1} parent=1 // pred_check_branch
      %29 = sbr.rel (0) target = $region13
    $region12: #{net_forward.1} parent=1 // pred_region
      _
    $region13: #{net_forward.1} parent=1 // pred_fallthru
      _
    // Predicated region
    $region14: #{net_forward.1} parent=1 // pred_check
      _
    $region15: #{net_forward.1} parent=1 // pred_check_branch
      %31 = sbr.rel (0) target = $region17
    $region16: #{net_forward.1} parent=1 // pred_region
      _
    $region17: #{net_forward.1} parent=1 // pred_fallthru
      _
    // Predicated region
    $region18: #{net_forward.1} parent=1 // pred_check
      _
    $region19: #{net_forward.1} parent=1 // pred_check_branch
      %33 = sbr.rel (0) target = $region21
    $region20: #{net_forward.1} parent=1 // pred_region
      _
    $region21: #{net_forward.1} parent=1 // pred_fallthru
      _
    // Predicated region
    $region22: #{net_forward.1} parent=1 // pred_check
      _
    $region23: #{net_forward.1} parent=1 // pred_check_branch
      %35 = sbr.rel (0) target = $region25
    $region24: #{net_forward.1} parent=1 // pred_region
      %s37 = ssub.s32 2048, 2048
      %38 = vsyncadd [#allocation5], %s37
      %s39 = sshll.u32 [#allocation4], 4
      %s40 = int_to_ptr.vmem [resolvable:$true] %s39
      %45 = dma.hbm_to_vmem [thread:$0]  %s5, 2048, %s40, [#allocation5], 64, 64, 4
    $region25: #{net_forward.1} parent=1 // pred_fallthru
      _
    // Predicated region
    $region26: #{net_forward.1} parent=1 // pred_check
      _
    $region27: #{net_forward.1} parent=1 // pred_check_branch
      %47 = sbr.rel (0) target = $region29
    $region28: #{net_forward.1} parent=1 // pred_region
      _
    $region29: #{net_forward.1} parent=1 // pred_fallthru
      _
    // Predicated region
    $region30: #{net_forward.1} parent=1 // pred_check
      _
    $region31: #{net_forward.1} parent=1 // pred_check_branch
      %49 = sbr.rel (0) target = $region33
    $region32: #{net_forward.1} parent=1 // pred_region
      %50 = dma.done [#allocation3], 25088
    $region33: #{net_forward.1} parent=1 // pred_fallthru
      _
    // Predicated region
    $region34: #{net_forward.1} parent=1 // pred_check
      _
    $region35: #{net_forward.1} parent=1 // pred_check_branch
      %52 = sbr.rel (0) target = $region37
    $region36: #{net_forward.1} parent=1 // pred_region
      %53 = dma.done [#allocation5], 2048
    $region37: #{net_forward.1} parent=1 // pred_fallthru
      _
    %v56 = vld [vmem:[%s0] sm:$0xff]
    %v57 = vld [vmem:[%s0 + $0x8] sm:$0xff]
    %v58 = vld [vmem:[%s0 + $0x10] sm:$0xff]
    %v59 = vld [vmem:[%s0 + $0x18] sm:$0xf]
    %v60 = vld [vmem:[%s0 + $0x1c] sm:$0xff]
    %v61 = vld [vmem:[%s0 + $0x24] sm:$0xff]
    %v62 = vld [vmem:[%s0 + $0x2c] sm:$0xff]
    %v63 = vld [vmem:[%s0 + $0x34] sm:$0xf]
    %v64 = vld [vmem:[#allocation2] sm:$0xff]
    %v65 = vld [vmem:[#allocation2 + $0x8] sm:$0xff]
    %v66 = vld [vmem:[#allocation2 + $0x10] sm:$0xff]
    %v67 = vld [vmem:[#allocation2 + $0x18] sm:$0xff]
    %v68 = vld [vmem:[#allocation2 + $0x20] sm:$0xff]
    %v69 = vld [vmem:[#allocation2 + $0x28] sm:$0xff]
    %v70 = vld [vmem:[#allocation2 + $0x30] sm:$0xff]
    %v71 = vld [vmem:[#allocation2 + $0x38] sm:$0xff]
    %v72 = vld [vmem:[#allocation2 + $0x40] sm:$0xff]
    %v73 = vld [vmem:[#allocation2 + $0x48] sm:$0xff]
    %v74 = vld [vmem:[#allocation2 + $0x50] sm:$0xff]
    %v75 = vld [vmem:[#allocation2 + $0x58] sm:$0xff]
    %v76 = vld [vmem:[#allocation2 + $0x60] sm:$0xff]
    %v77 = vld [vmem:[#allocation2 + $0x68] sm:$0xff]
    %v78 = vld [vmem:[#allocation2 + $0x70] sm:$0xff]
    %v79 = vld [vmem:[#allocation2 + $0x78] sm:$0xff]
    %v80 = vld [vmem:[#allocation2 + $0x80] sm:$0xff]
    %v81 = vld [vmem:[#allocation2 + $0x88] sm:$0xff]
    %v82 = vld [vmem:[#allocation2 + $0x90] sm:$0xff]
    %v83 = vld [vmem:[#allocation2 + $0x98] sm:$0xff]
    %v84 = vld [vmem:[#allocation2 + $0xa0] sm:$0xff]
    %v85 = vld [vmem:[#allocation2 + $0xa8] sm:$0xff]
    %v86 = vld [vmem:[#allocation2 + $0xb0] sm:$0xff]
    %v87 = vld [vmem:[#allocation2 + $0xb8] sm:$0xff]
    %v88 = vld [vmem:[#allocation2 + $0xc0] sm:$0xff]
    %v89 = vld [vmem:[#allocation2 + $0xc8] sm:$0xff]
    %v90 = vld [vmem:[#allocation2 + $0xd0] sm:$0xff]
    %v91 = vld [vmem:[#allocation2 + $0xd8] sm:$0xff]
    %v92 = vld [vmem:[#allocation2 + $0xe0] sm:$0xff]
    %v93 = vld [vmem:[#allocation2 + $0xe8] sm:$0xff]
    %v94 = vld [vmem:[#allocation2 + $0xf0] sm:$0xff]
    %v95 = vld [vmem:[#allocation2 + $0xf8] sm:$0xff]
    %v96 = vld [vmem:[#allocation2 + $0x100] sm:$0xff]
    %v97 = vld [vmem:[#allocation2 + $0x108] sm:$0xff]
    %v98 = vld [vmem:[#allocation2 + $0x110] sm:$0xff]
    %v99 = vld [vmem:[#allocation2 + $0x118] sm:$0xff]
    %v100 = vld [vmem:[#allocation2 + $0x120] sm:$0xff]
    %v101 = vld [vmem:[#allocation2 + $0x128] sm:$0xff]
    %v102 = vld [vmem:[#allocation2 + $0x130] sm:$0xff]
    %v103 = vld [vmem:[#allocation2 + $0x138] sm:$0xff]
    %v104 = vld [vmem:[#allocation2 + $0x140] sm:$0xff]
    %v105 = vld [vmem:[#allocation2 + $0x148] sm:$0xff]
    %v106 = vld [vmem:[#allocation2 + $0x150] sm:$0xff]
    %v107 = vld [vmem:[#allocation2 + $0x158] sm:$0xff]
    %v108 = vld [vmem:[#allocation2 + $0x160] sm:$0xff]
    %v109 = vld [vmem:[#allocation2 + $0x168] sm:$0xff]
    %v110 = vld [vmem:[#allocation2 + $0x170] sm:$0xff]
    %v111 = vld [vmem:[#allocation2 + $0x178] sm:$0xff]
    %v112 = vld [vmem:[#allocation2 + $0x180] sm:$0xff]
    %v113 = vld [vmem:[#allocation2 + $0x188] sm:$0xff]
    %v114 = vld [vmem:[#allocation2 + $0x190] sm:$0xff]
    %v115 = vld [vmem:[#allocation2 + $0x198] sm:$0xff]
    %v116 = vld [vmem:[#allocation2 + $0x1a0] sm:$0xff]
    %v117 = vld [vmem:[#allocation2 + $0x1a8] sm:$0xff]
    %v118 = vld [vmem:[#allocation2 + $0x1b0] sm:$0xff]
    %v119 = vld [vmem:[#allocation2 + $0x1b8] sm:$0xff]
    %v120 = vld [vmem:[#allocation2 + $0x1c0] sm:$0xff]
    %v121 = vld [vmem:[#allocation2 + $0x1c8] sm:$0xff]
    %v122 = vld [vmem:[#allocation2 + $0x1d0] sm:$0xff]
    %v123 = vld [vmem:[#allocation2 + $0x1d8] sm:$0xff]
    %v124 = vld [vmem:[#allocation2 + $0x1e0] sm:$0xff]
    %v125 = vld [vmem:[#allocation2 + $0x1e8] sm:$0xff]
    %v126 = vld [vmem:[#allocation2 + $0x1f0] sm:$0xff]
    %v127 = vld [vmem:[#allocation2 + $0x1f8] sm:$0xff]
    %v128 = vld [vmem:[#allocation2 + $0x200] sm:$0xff]
    %v129 = vld [vmem:[#allocation2 + $0x208] sm:$0xff]
    %v130 = vld [vmem:[#allocation2 + $0x210] sm:$0xff]
    %v131 = vld [vmem:[#allocation2 + $0x218] sm:$0xff]
    %v132 = vld [vmem:[#allocation2 + $0x220] sm:$0xff]
    %v133 = vld [vmem:[#allocation2 + $0x228] sm:$0xff]
    %v134 = vld [vmem:[#allocation2 + $0x230] sm:$0xff]
    %v135 = vld [vmem:[#allocation2 + $0x238] sm:$0xff]
    %v136 = vld [vmem:[#allocation2 + $0x240] sm:$0xff]
    %v137 = vld [vmem:[#allocation2 + $0x248] sm:$0xff]
    %v138 = vld [vmem:[#allocation2 + $0x250] sm:$0xff]
    %v139 = vld [vmem:[#allocation2 + $0x258] sm:$0xff]
    %v140 = vld [vmem:[#allocation2 + $0x260] sm:$0xff]
    %v141 = vld [vmem:[#allocation2 + $0x268] sm:$0xff]
    %v142 = vld [vmem:[#allocation2 + $0x270] sm:$0xff]
    %v143 = vld [vmem:[#allocation2 + $0x278] sm:$0xff]
    %v144 = vld [vmem:[#allocation2 + $0x280] sm:$0xff]
    %v145 = vld [vmem:[#allocation2 + $0x288] sm:$0xff]
    %v146 = vld [vmem:[#allocation2 + $0x290] sm:$0xff]
    %v147 = vld [vmem:[#allocation2 + $0x298] sm:$0xff]
    %v148 = vld [vmem:[#allocation2 + $0x2a0] sm:$0xff]
    %v149 = vld [vmem:[#allocation2 + $0x2a8] sm:$0xff]
    %v150 = vld [vmem:[#allocation2 + $0x2b0] sm:$0xff]
    %v151 = vld [vmem:[#allocation2 + $0x2b8] sm:$0xff]
    %v152 = vld [vmem:[#allocation2 + $0x2c0] sm:$0xff]
    %v153 = vld [vmem:[#allocation2 + $0x2c8] sm:$0xff]
    %v154 = vld [vmem:[#allocation2 + $0x2d0] sm:$0xff]
    %v155 = vld [vmem:[#allocation2 + $0x2d8] sm:$0xff]
    %v156 = vld [vmem:[#allocation2 + $0x2e0] sm:$0xff]
    %v157 = vld [vmem:[#allocation2 + $0x2e8] sm:$0xff]
    %v158 = vld [vmem:[#allocation2 + $0x2f0] sm:$0xff]
    %v159 = vld [vmem:[#allocation2 + $0x2f8] sm:$0xff]
    %v160 = vld [vmem:[#allocation2 + $0x300] sm:$0xff]
    %v161 = vld [vmem:[#allocation2 + $0x308] sm:$0xff]
    %v162 = vld [vmem:[#allocation2 + $0x310] sm:$0xff]
    %v163 = vld [vmem:[#allocation2 + $0x318] sm:$0xff]
    %v164 = vld [vmem:[#allocation2 + $0x320] sm:$0xff]
    %v165 = vld [vmem:[#allocation2 + $0x328] sm:$0xff]
    %v166 = vld [vmem:[#allocation2 + $0x330] sm:$0xff]
    %v167 = vld [vmem:[#allocation2 + $0x338] sm:$0xff]
    %v168 = vld [vmem:[#allocation2 + $0x340] sm:$0xff]
    %v169 = vld [vmem:[#allocation2 + $0x348] sm:$0xff]
    %v170 = vld [vmem:[#allocation2 + $0x350] sm:$0xff]
    %v171 = vld [vmem:[#allocation2 + $0x358] sm:$0xff]
    %v172 = vld [vmem:[#allocation2 + $0x360] sm:$0xff]
    %v173 = vld [vmem:[#allocation2 + $0x368] sm:$0xff]
    %v174 = vld [vmem:[#allocation2 + $0x370] sm:$0xff]
    %v175 = vld [vmem:[#allocation2 + $0x378] sm:$0xff]
    %v176 = vld [vmem:[#allocation2 + $0x380] sm:$0xff]
    %v177 = vld [vmem:[#allocation2 + $0x388] sm:$0xff]
    %v178 = vld [vmem:[#allocation2 + $0x390] sm:$0xff]
    %v179 = vld [vmem:[#allocation2 + $0x398] sm:$0xff]
    %v180 = vld [vmem:[#allocation2 + $0x3a0] sm:$0xff]
    %v181 = vld [vmem:[#allocation2 + $0x3a8] sm:$0xff]
    %v182 = vld [vmem:[#allocation2 + $0x3b0] sm:$0xff]
    %v183 = vld [vmem:[#allocation2 + $0x3b8] sm:$0xff]
    %v184 = vld [vmem:[#allocation2 + $0x3c0] sm:$0xff]
    %v185 = vld [vmem:[#allocation2 + $0x3c8] sm:$0xff]
    %v186 = vld [vmem:[#allocation2 + $0x3d0] sm:$0xff]
    %v187 = vld [vmem:[#allocation2 + $0x3d8] sm:$0xff]
    %v188 = vld [vmem:[#allocation2 + $0x3e0] sm:$0xff]
    %v189 = vld [vmem:[#allocation2 + $0x3e8] sm:$0xff]
    %v190 = vld [vmem:[#allocation2 + $0x3f0] sm:$0xff]
    %v191 = vld [vmem:[#allocation2 + $0x3f8] sm:$0xff]
    %v192 = vld [vmem:[#allocation2 + $0x400] sm:$0xff]
    %v193 = vld [vmem:[#allocation2 + $0x408] sm:$0xff]
    %v194 = vld [vmem:[#allocation2 + $0x410] sm:$0xff]
    %v195 = vld [vmem:[#allocation2 + $0x418] sm:$0xff]
    %v196 = vld [vmem:[#allocation2 + $0x420] sm:$0xff]
    %v197 = vld [vmem:[#allocation2 + $0x428] sm:$0xff]
    %v198 = vld [vmem:[#allocation2 + $0x430] sm:$0xff]
    %v199 = vld [vmem:[#allocation2 + $0x438] sm:$0xff]
    %v200 = vld [vmem:[#allocation2 + $0x440] sm:$0xff]
    %v201 = vld [vmem:[#allocation2 + $0x448] sm:$0xff]
    %v202 = vld [vmem:[#allocation2 + $0x450] sm:$0xff]
    %v203 = vld [vmem:[#allocation2 + $0x458] sm:$0xff]
    %v204 = vld [vmem:[#allocation2 + $0x460] sm:$0xff]
    %v205 = vld [vmem:[#allocation2 + $0x468] sm:$0xff]
    %v206 = vld [vmem:[#allocation2 + $0x470] sm:$0xff]
    %v207 = vld [vmem:[#allocation2 + $0x478] sm:$0xff]
    %v208 = vld [vmem:[#allocation2 + $0x480] sm:$0xff]
    %v209 = vld [vmem:[#allocation2 + $0x488] sm:$0xff]
    %v210 = vld [vmem:[#allocation2 + $0x490] sm:$0xff]
    %v211 = vld [vmem:[#allocation2 + $0x498] sm:$0xff]
    %v212 = vld [vmem:[#allocation2 + $0x4a0] sm:$0xff]
    %v213 = vld [vmem:[#allocation2 + $0x4a8] sm:$0xff]
    %v214 = vld [vmem:[#allocation2 + $0x4b0] sm:$0xff]
    %v215 = vld [vmem:[#allocation2 + $0x4b8] sm:$0xff]
    %v216 = vld [vmem:[#allocation2 + $0x4c0] sm:$0xff]
    %v217 = vld [vmem:[#allocation2 + $0x4c8] sm:$0xff]
    %v218 = vld [vmem:[#allocation2 + $0x4d0] sm:$0xff]
    %v219 = vld [vmem:[#allocation2 + $0x4d8] sm:$0xff]
    %v220 = vld [vmem:[#allocation2 + $0x4e0] sm:$0xff]
    %v221 = vld [vmem:[#allocation2 + $0x4e8] sm:$0xff]
    %v222 = vld [vmem:[#allocation2 + $0x4f0] sm:$0xff]
    %v223 = vld [vmem:[#allocation2 + $0x4f8] sm:$0xff]
    %v224 = vld [vmem:[#allocation2 + $0x500] sm:$0xff]
    %v225 = vld [vmem:[#allocation2 + $0x508] sm:$0xff]
    %v226 = vld [vmem:[#allocation2 + $0x510] sm:$0xff]
    %v227 = vld [vmem:[#allocation2 + $0x518] sm:$0xff]
    %v228 = vld [vmem:[#allocation2 + $0x520] sm:$0xff]
    %v229 = vld [vmem:[#allocation2 + $0x528] sm:$0xff]
    %v230 = vld [vmem:[#allocation2 + $0x530] sm:$0xff]
    %v231 = vld [vmem:[#allocation2 + $0x538] sm:$0xff]
    %v232 = vld [vmem:[#allocation2 + $0x540] sm:$0xff]
    %v233 = vld [vmem:[#allocation2 + $0x548] sm:$0xff]
    %v234 = vld [vmem:[#allocation2 + $0x550] sm:$0xff]
    %v235 = vld [vmem:[#allocation2 + $0x558] sm:$0xff]
    %v236 = vld [vmem:[#allocation2 + $0x560] sm:$0xff]
    %v237 = vld [vmem:[#allocation2 + $0x568] sm:$0xff]
    %v238 = vld [vmem:[#allocation2 + $0x570] sm:$0xff]
    %v239 = vld [vmem:[#allocation2 + $0x578] sm:$0xff]
    %v240 = vld [vmem:[#allocation2 + $0x580] sm:$0xff]
    %v241 = vld [vmem:[#allocation2 + $0x588] sm:$0xff]
    %v242 = vld [vmem:[#allocation2 + $0x590] sm:$0xff]
    %v243 = vld [vmem:[#allocation2 + $0x598] sm:$0xff]
    %v244 = vld [vmem:[#allocation2 + $0x5a0] sm:$0xff]
    %v245 = vld [vmem:[#allocation2 + $0x5a8] sm:$0xff]
    %v246 = vld [vmem:[#allocation2 + $0x5b0] sm:$0xff]
    %v247 = vld [vmem:[#allocation2 + $0x5b8] sm:$0xff]
    %v248 = vld [vmem:[#allocation2 + $0x5c0] sm:$0xff]
    %v249 = vld [vmem:[#allocation2 + $0x5c8] sm:$0xff]
    %v250 = vld [vmem:[#allocation2 + $0x5d0] sm:$0xff]
    %v251 = vld [vmem:[#allocation2 + $0x5d8] sm:$0xff]
    %v252 = vld [vmem:[#allocation2 + $0x5e0] sm:$0xff]
    %v253 = vld [vmem:[#allocation2 + $0x5e8] sm:$0xff]
    %v254 = vld [vmem:[#allocation2 + $0x5f0] sm:$0xff]
    %v255 = vld [vmem:[#allocation2 + $0x5f8] sm:$0xff]
    %v256 = vld [vmem:[#allocation2 + $0x600] sm:$0xff]
    %v257 = vld [vmem:[#allocation2 + $0x608] sm:$0xff]
    %v258 = vld [vmem:[#allocation2 + $0x610] sm:$0xff]
    %v259 = vld [vmem:[#allocation2 + $0x618] sm:$0xff]
    %v260 = vld [vmem:[%s2] sm:$0xf]
    %v262 = vlaneseq
    %v263 = vshrl.u32 %v262, 7
    %v264 = vsub.s32 0, %v263
    %v265 = vrot.slane %v260, %v264
    %v266 = vlaneseq
    %v267 = vshrl.u32 %v266, 7
    %v268 = vsub.s32 1, %v267
    %v269 = vrot.slane %v260, %v268
    %v270 = vlaneseq
    %v271 = vshrl.u32 %v270, 7
    %v272 = vsub.s32 2, %v271
    %v273 = vrot.slane %v260, %v272
    %v274 = vlaneseq
    %v275 = vshrl.u32 %v274, 7
    %v276 = vsub.s32 3, %v275
    %v277 = vrot.slane %v260, %v276
    %v290 = vunpack.c.l.b16 %v56
    %v291 = vunpack.c.h.b16 %v56
    %v292 = vunpack.c.l.b16 %v57
    %v293 = vunpack.c.h.b16 %v57
    %v294 = vunpack.c.l.b16 %v58
    %v295 = vunpack.c.h.b16 %v58
    %v296 = vunpack.c.l.b16 %v59
    %v297 = vunpack.c.l.b16 %v60
    %v298 = vunpack.c.h.b16 %v60
    %v299 = vunpack.c.l.b16 %v61
    %v300 = vunpack.c.h.b16 %v61
    %v301 = vunpack.c.l.b16 %v62
    %v302 = vunpack.c.h.b16 %v62
    %v303 = vunpack.c.l.b16 %v63
    %v304 = vpack.c.b16 %v297, %v290
    %v305 = vpack.c.b16 %v298, %v291
    %v306 = vpack.c.b16 %v299, %v292
    %v307 = vpack.c.b16 %v300, %v293
    %v308 = vpack.c.b16 %v301, %v294
    %v309 = vpack.c.b16 %v302, %v295
    %v310 = vpack.c.b16 %v303, %v296
    %v513 = vunpack.c.l.b16 %v64
    %v514 = vunpack.c.h.b16 %v64
    %v515 = vunpack.c.l.b16 %v65
    %v516 = vunpack.c.h.b16 %v65
    %v517 = vunpack.c.l.b16 %v66
    %v518 = vunpack.c.h.b16 %v66
    %v519 = vunpack.c.l.b16 %v67
    %v520 = vunpack.c.h.b16 %v67
    %v521 = vunpack.c.l.b16 %v68
    %v522 = vunpack.c.h.b16 %v68
    %v523 = vunpack.c.l.b16 %v69
    %v524 = vunpack.c.h.b16 %v69
    %v525 = vunpack.c.l.b16 %v70
    %v526 = vunpack.c.h.b16 %v70
    %v527 = vunpack.c.l.b16 %v71
    %v528 = vunpack.c.h.b16 %v71
    %v529 = vunpack.c.l.b16 %v72
    %v530 = vunpack.c.h.b16 %v72
    %v531 = vunpack.c.l.b16 %v73
    %v532 = vunpack.c.h.b16 %v73
    %v533 = vunpack.c.l.b16 %v74
    %v534 = vunpack.c.h.b16 %v74
    %v535 = vunpack.c.l.b16 %v75
    %v536 = vunpack.c.h.b16 %v75
    %v537 = vunpack.c.l.b16 %v76
    %v538 = vunpack.c.h.b16 %v76
    %v539 = vunpack.c.l.b16 %v77
    %v540 = vunpack.c.h.b16 %v77
    %v541 = vunpack.c.l.b16 %v78
    %v542 = vunpack.c.h.b16 %v78
    %v543 = vunpack.c.l.b16 %v79
    %v544 = vunpack.c.h.b16 %v79
    %v545 = vunpack.c.l.b16 %v80
    %v546 = vunpack.c.h.b16 %v80
    %v547 = vunpack.c.l.b16 %v81
    %v548 = vunpack.c.h.b16 %v81
    %v549 = vunpack.c.l.b16 %v82
    %v550 = vunpack.c.h.b16 %v82
    %v551 = vunpack.c.l.b16 %v83
    %v552 = vunpack.c.h.b16 %v83
    %v553 = vunpack.c.l.b16 %v84
    %v554 = vunpack.c.h.b16 %v84
    %v555 = vunpack.c.l.b16 %v85
    %v556 = vunpack.c.h.b16 %v85
    %v557 = vunpack.c.l.b16 %v86
    %v558 = vunpack.c.h.b16 %v86
    %v559 = vunpack.c.l.b16 %v87
    %v560 = vunpack.c.h.b16 %v87
    %v561 = vunpack.c.l.b16 %v88
    %v562 = vunpack.c.h.b16 %v88
    %v563 = vunpack.c.l.b16 %v89
    %v564 = vunpack.c.h.b16 %v89
    %v565 = vunpack.c.l.b16 %v90
    %v566 = vunpack.c.h.b16 %v90
    %v567 = vunpack.c.l.b16 %v91
    %v568 = vunpack.c.h.b16 %v91
    %v569 = vunpack.c.l.b16 %v92
    %v570 = vunpack.c.h.b16 %v92
    %v571 = vunpack.c.l.b16 %v93
    %v572 = vunpack.c.h.b16 %v93
    %v573 = vunpack.c.l.b16 %v94
    %v574 = vunpack.c.h.b16 %v94
    %v575 = vunpack.c.l.b16 %v95
    %v576 = vunpack.c.h.b16 %v95
    %v577 = vunpack.c.l.b16 %v96
    %v578 = vunpack.c.h.b16 %v96
    %v579 = vunpack.c.l.b16 %v97
    %v580 = vunpack.c.h.b16 %v97
    %v581 = vunpack.c.l.b16 %v98
    %v582 = vunpack.c.h.b16 %v98
    %v583 = vunpack.c.l.b16 %v99
    %v584 = vunpack.c.h.b16 %v99
    %v585 = vunpack.c.l.b16 %v100
    %v586 = vunpack.c.h.b16 %v100
    %v587 = vunpack.c.l.b16 %v101
    %v588 = vunpack.c.h.b16 %v101
    %v589 = vunpack.c.l.b16 %v102
    %v590 = vunpack.c.h.b16 %v102
    %v591 = vunpack.c.l.b16 %v103
    %v592 = vunpack.c.h.b16 %v103
    %v593 = vunpack.c.l.b16 %v104
    %v594 = vunpack.c.h.b16 %v104
    %v595 = vunpack.c.l.b16 %v105
    %v596 = vunpack.c.h.b16 %v105
    %v597 = vunpack.c.l.b16 %v106
    %v598 = vunpack.c.h.b16 %v106
    %v599 = vunpack.c.l.b16 %v107
    %v600 = vunpack.c.h.b16 %v107
    %v601 = vunpack.c.l.b16 %v108
    %v602 = vunpack.c.h.b16 %v108
    %v603 = vunpack.c.l.b16 %v109
    %v604 = vunpack.c.h.b16 %v109
    %v605 = vunpack.c.l.b16 %v110
    %v606 = vunpack.c.h.b16 %v110
    %v607 = vunpack.c.l.b16 %v111
    %v608 = vunpack.c.h.b16 %v111
    %v609 = vunpack.c.l.b16 %v112
    %v610 = vunpack.c.h.b16 %v112
    %v611 = vunpack.c.l.b16 %v113
    %v612 = vunpack.c.h.b16 %v113
    %v613 = vunpack.c.l.b16 %v114
    %v614 = vunpack.c.h.b16 %v114
    %v615 = vunpack.c.l.b16 %v115
    %v616 = vunpack.c.h.b16 %v115
    %v617 = vunpack.c.l.b16 %v116
    %v618 = vunpack.c.h.b16 %v116
    %v619 = vunpack.c.l.b16 %v117
    %v620 = vunpack.c.h.b16 %v117
    %v621 = vunpack.c.l.b16 %v118
    %v622 = vunpack.c.h.b16 %v118
    %v623 = vunpack.c.l.b16 %v119
    %v624 = vunpack.c.h.b16 %v119
    %v625 = vunpack.c.l.b16 %v120
    %v626 = vunpack.c.h.b16 %v120
    %v627 = vunpack.c.l.b16 %v121
    %v628 = vunpack.c.h.b16 %v121
    %v629 = vunpack.c.l.b16 %v122
    %v630 = vunpack.c.h.b16 %v122
    %v631 = vunpack.c.l.b16 %v123
    %v632 = vunpack.c.h.b16 %v123
    %v633 = vunpack.c.l.b16 %v124
    %v634 = vunpack.c.h.b16 %v124
    %v635 = vunpack.c.l.b16 %v125
    %v636 = vunpack.c.h.b16 %v125
    %v637 = vunpack.c.l.b16 %v126
    %v638 = vunpack.c.h.b16 %v126
    %v639 = vunpack.c.l.b16 %v127
    %v640 = vunpack.c.h.b16 %v127
    %v641 = vunpack.c.l.b16 %v128
    %v642 = vunpack.c.h.b16 %v128
    %v643 = vunpack.c.l.b16 %v129
    %v644 = vunpack.c.h.b16 %v129
    %v645 = vunpack.c.l.b16 %v130
    %v646 = vunpack.c.h.b16 %v130
    %v647 = vunpack.c.l.b16 %v131
    %v648 = vunpack.c.h.b16 %v131
    %v649 = vunpack.c.l.b16 %v132
    %v650 = vunpack.c.h.b16 %v132
    %v651 = vunpack.c.l.b16 %v133
    %v652 = vunpack.c.h.b16 %v133
    %v653 = vunpack.c.l.b16 %v134
    %v654 = vunpack.c.h.b16 %v134
    %v655 = vunpack.c.l.b16 %v135
    %v656 = vunpack.c.h.b16 %v135
    %v657 = vunpack.c.l.b16 %v136
    %v658 = vunpack.c.h.b16 %v136
    %v659 = vunpack.c.l.b16 %v137
    %v660 = vunpack.c.h.b16 %v137
    %v661 = vunpack.c.l.b16 %v138
    %v662 = vunpack.c.h.b16 %v138
    %v663 = vunpack.c.l.b16 %v139
    %v664 = vunpack.c.h.b16 %v139
    %v665 = vunpack.c.l.b16 %v140
    %v666 = vunpack.c.h.b16 %v140
    %v667 = vunpack.c.l.b16 %v141
    %v668 = vunpack.c.h.b16 %v141
    %v669 = vunpack.c.l.b16 %v142
    %v670 = vunpack.c.h.b16 %v142
    %v671 = vunpack.c.l.b16 %v143
    %v672 = vunpack.c.h.b16 %v143
    %v673 = vunpack.c.l.b16 %v144
    %v674 = vunpack.c.h.b16 %v144
    %v675 = vunpack.c.l.b16 %v145
    %v676 = vunpack.c.h.b16 %v145
    %v677 = vunpack.c.l.b16 %v146
    %v678 = vunpack.c.h.b16 %v146
    %v679 = vunpack.c.l.b16 %v147
    %v680 = vunpack.c.h.b16 %v147
    %v681 = vunpack.c.l.b16 %v148
    %v682 = vunpack.c.h.b16 %v148
    %v683 = vunpack.c.l.b16 %v149
    %v684 = vunpack.c.h.b16 %v149
    %v685 = vunpack.c.l.b16 %v150
    %v686 = vunpack.c.h.b16 %v150
    %v687 = vunpack.c.l.b16 %v151
    %v688 = vunpack.c.h.b16 %v151
    %v689 = vunpack.c.l.b16 %v152
    %v690 = vunpack.c.h.b16 %v152
    %v691 = vunpack.c.l.b16 %v153
    %v692 = vunpack.c.h.b16 %v153
    %v693 = vunpack.c.l.b16 %v154
    %v694 = vunpack.c.h.b16 %v154
    %v695 = vunpack.c.l.b16 %v155
    %v696 = vunpack.c.h.b16 %v155
    %v697 = vunpack.c.l.b16 %v156
    %v698 = vunpack.c.h.b16 %v156
    %v699 = vunpack.c.l.b16 %v157
    %v700 = vunpack.c.h.b16 %v157
    %v701 = vunpack.c.l.b16 %v158
    %v702 = vunpack.c.h.b16 %v158
    %v703 = vunpack.c.l.b16 %v159
    %v704 = vunpack.c.h.b16 %v159
    %v705 = vunpack.c.l.b16 %v160
    %v706 = vunpack.c.h.b16 %v160
    %v707 = vunpack.c.l.b16 %v161
    %v708 = vunpack.c.h.b16 %v161
    %v709 = vunpack.c.l.b16 %v162
    %v710 = vunpack.c.h.b16 %v162
    %v711 = vunpack.c.l.b16 %v163
    %v712 = vunpack.c.h.b16 %v163
    %v713 = vunpack.c.l.b16 %v164
    %v714 = vunpack.c.h.b16 %v164
    %v715 = vunpack.c.l.b16 %v165
    %v716 = vunpack.c.h.b16 %v165
    %v717 = vunpack.c.l.b16 %v166
    %v718 = vunpack.c.h.b16 %v166
    %v719 = vunpack.c.l.b16 %v167
    %v720 = vunpack.c.h.b16 %v167
    %v721 = vunpack.c.l.b16 %v168
    %v722 = vunpack.c.h.b16 %v168
    %v723 = vunpack.c.l.b16 %v169
    %v724 = vunpack.c.h.b16 %v169
    %v725 = vunpack.c.l.b16 %v170
    %v726 = vunpack.c.h.b16 %v170
    %v727 = vunpack.c.l.b16 %v171
    %v728 = vunpack.c.h.b16 %v171
    %v729 = vunpack.c.l.b16 %v172
    %v730 = vunpack.c.h.b16 %v172
    %v731 = vunpack.c.l.b16 %v173
    %v732 = vunpack.c.h.b16 %v173
    %v733 = vunpack.c.l.b16 %v174
    %v734 = vunpack.c.h.b16 %v174
    %v735 = vunpack.c.l.b16 %v175
    %v736 = vunpack.c.h.b16 %v175
    %v737 = vunpack.c.l.b16 %v176
    %v738 = vunpack.c.h.b16 %v176
    %v739 = vunpack.c.l.b16 %v177
    %v740 = vunpack.c.h.b16 %v177
    %v741 = vunpack.c.l.b16 %v178
    %v742 = vunpack.c.h.b16 %v178
    %v743 = vunpack.c.l.b16 %v179
    %v744 = vunpack.c.h.b16 %v179
    %v745 = vunpack.c.l.b16 %v180
    %v746 = vunpack.c.h.b16 %v180
    %v747 = vunpack.c.l.b16 %v181
    %v748 = vunpack.c.h.b16 %v181
    %v749 = vunpack.c.l.b16 %v182
    %v750 = vunpack.c.h.b16 %v182
    %v751 = vunpack.c.l.b16 %v183
    %v752 = vunpack.c.h.b16 %v183
    %v753 = vunpack.c.l.b16 %v184
    %v754 = vunpack.c.h.b16 %v184
    %v755 = vunpack.c.l.b16 %v185
    %v756 = vunpack.c.h.b16 %v185
    %v757 = vunpack.c.l.b16 %v186
    %v758 = vunpack.c.h.b16 %v186
    %v759 = vunpack.c.l.b16 %v187
    %v760 = vunpack.c.h.b16 %v187
    %v761 = vunpack.c.l.b16 %v188
    %v762 = vunpack.c.h.b16 %v188
    %v763 = vunpack.c.l.b16 %v189
    %v764 = vunpack.c.h.b16 %v189
    %v765 = vunpack.c.l.b16 %v190
    %v766 = vunpack.c.h.b16 %v190
    %v767 = vunpack.c.l.b16 %v191
    %v768 = vunpack.c.h.b16 %v191
    %v769 = vunpack.c.l.b16 %v192
    %v770 = vunpack.c.h.b16 %v192
    %v771 = vunpack.c.l.b16 %v193
    %v772 = vunpack.c.h.b16 %v193
    %v773 = vunpack.c.l.b16 %v194
    %v774 = vunpack.c.h.b16 %v194
    %v775 = vunpack.c.l.b16 %v195
    %v776 = vunpack.c.h.b16 %v195
    %v777 = vunpack.c.l.b16 %v196
    %v778 = vunpack.c.h.b16 %v196
    %v779 = vunpack.c.l.b16 %v197
    %v780 = vunpack.c.h.b16 %v197
    %v781 = vunpack.c.l.b16 %v198
    %v782 = vunpack.c.h.b16 %v198
    %v783 = vunpack.c.l.b16 %v199
    %v784 = vunpack.c.h.b16 %v199
    %v785 = vunpack.c.l.b16 %v200
    %v786 = vunpack.c.h.b16 %v200
    %v787 = vunpack.c.l.b16 %v201
    %v788 = vunpack.c.h.b16 %v201
    %v789 = vunpack.c.l.b16 %v202
    %v790 = vunpack.c.h.b16 %v202
    %v791 = vunpack.c.l.b16 %v203
    %v792 = vunpack.c.h.b16 %v203
    %v793 = vunpack.c.l.b16 %v204
    %v794 = vunpack.c.h.b16 %v204
    %v795 = vunpack.c.l.b16 %v205
    %v796 = vunpack.c.h.b16 %v205
    %v797 = vunpack.c.l.b16 %v206
    %v798 = vunpack.c.h.b16 %v206
    %v799 = vunpack.c.l.b16 %v207
    %v800 = vunpack.c.h.b16 %v207
    %v801 = vunpack.c.l.b16 %v208
    %v802 = vunpack.c.h.b16 %v208
    %v803 = vunpack.c.l.b16 %v209
    %v804 = vunpack.c.h.b16 %v209
    %v805 = vunpack.c.l.b16 %v210
    %v806 = vunpack.c.h.b16 %v210
    %v807 = vunpack.c.l.b16 %v211
    %v808 = vunpack.c.h.b16 %v211
    %v809 = vunpack.c.l.b16 %v212
    %v810 = vunpack.c.h.b16 %v212
    %v811 = vunpack.c.l.b16 %v213
    %v812 = vunpack.c.h.b16 %v213
    %v813 = vunpack.c.l.b16 %v214
    %v814 = vunpack.c.h.b16 %v214
    %v815 = vunpack.c.l.b16 %v215
    %v816 = vunpack.c.h.b16 %v215
    %v817 = vunpack.c.l.b16 %v216
    %v818 = vunpack.c.h.b16 %v216
    %v819 = vunpack.c.l.b16 %v217
    %v820 = vunpack.c.h.b16 %v217
    %v821 = vunpack.c.l.b16 %v218
    %v822 = vunpack.c.h.b16 %v218
    %v823 = vunpack.c.l.b16 %v219
    %v824 = vunpack.c.h.b16 %v219
    %v825 = vunpack.c.l.b16 %v220
    %v826 = vunpack.c.h.b16 %v220
    %v827 = vunpack.c.l.b16 %v221
    %v828 = vunpack.c.h.b16 %v221
    %v829 = vunpack.c.l.b16 %v222
    %v830 = vunpack.c.h.b16 %v222
    %v831 = vunpack.c.l.b16 %v223
    %v832 = vunpack.c.h.b16 %v223
    %v833 = vunpack.c.l.b16 %v224
    %v834 = vunpack.c.h.b16 %v224
    %v835 = vunpack.c.l.b16 %v225
    %v836 = vunpack.c.h.b16 %v225
    %v837 = vunpack.c.l.b16 %v226
    %v838 = vunpack.c.h.b16 %v226
    %v839 = vunpack.c.l.b16 %v227
    %v840 = vunpack.c.h.b16 %v227
    %v841 = vunpack.c.l.b16 %v228
    %v842 = vunpack.c.h.b16 %v228
    %v843 = vunpack.c.l.b16 %v229
    %v844 = vunpack.c.h.b16 %v229
    %v845 = vunpack.c.l.b16 %v230
    %v846 = vunpack.c.h.b16 %v230
    %v847 = vunpack.c.l.b16 %v231
    %v848 = vunpack.c.h.b16 %v231
    %v849 = vunpack.c.l.b16 %v232
    %v850 = vunpack.c.h.b16 %v232
    %v851 = vunpack.c.l.b16 %v233
    %v852 = vunpack.c.h.b16 %v233
    %v853 = vunpack.c.l.b16 %v234
    %v854 = vunpack.c.h.b16 %v234
    %v855 = vunpack.c.l.b16 %v235
    %v856 = vunpack.c.h.b16 %v235
    %v857 = vunpack.c.l.b16 %v236
    %v858 = vunpack.c.h.b16 %v236
    %v859 = vunpack.c.l.b16 %v237
    %v860 = vunpack.c.h.b16 %v237
    %v861 = vunpack.c.l.b16 %v238
    %v862 = vunpack.c.h.b16 %v238
    %v863 = vunpack.c.l.b16 %v239
    %v864 = vunpack.c.h.b16 %v239
    %v865 = vunpack.c.l.b16 %v240
    %v866 = vunpack.c.h.b16 %v240
    %v867 = vunpack.c.l.b16 %v241
    %v868 = vunpack.c.h.b16 %v241
    %v869 = vunpack.c.l.b16 %v242
    %v870 = vunpack.c.h.b16 %v242
    %v871 = vunpack.c.l.b16 %v243
    %v872 = vunpack.c.h.b16 %v243
    %v873 = vunpack.c.l.b16 %v244
    %v874 = vunpack.c.h.b16 %v244
    %v875 = vunpack.c.l.b16 %v245
    %v876 = vunpack.c.h.b16 %v245
    %v877 = vunpack.c.l.b16 %v246
    %v878 = vunpack.c.h.b16 %v246
    %v879 = vunpack.c.l.b16 %v247
    %v880 = vunpack.c.h.b16 %v247
    %v881 = vunpack.c.l.b16 %v248
    %v882 = vunpack.c.h.b16 %v248
    %v883 = vunpack.c.l.b16 %v249
    %v884 = vunpack.c.h.b16 %v249
    %v885 = vunpack.c.l.b16 %v250
    %v886 = vunpack.c.h.b16 %v250
    %v887 = vunpack.c.l.b16 %v251
    %v888 = vunpack.c.h.b16 %v251
    %v889 = vunpack.c.l.b16 %v252
    %v890 = vunpack.c.h.b16 %v252
    %v891 = vunpack.c.l.b16 %v253
    %v892 = vunpack.c.h.b16 %v253
    %v893 = vunpack.c.l.b16 %v254
    %v894 = vunpack.c.h.b16 %v254
    %v895 = vunpack.c.l.b16 %v255
    %v896 = vunpack.c.h.b16 %v255
    %v897 = vunpack.c.l.b16 %v256
    %v898 = vunpack.c.h.b16 %v256
    %v899 = vunpack.c.l.b16 %v257
    %v900 = vunpack.c.h.b16 %v257
    %v901 = vunpack.c.l.b16 %v258
    %v902 = vunpack.c.h.b16 %v258
    %v903 = vunpack.c.l.b16 %v259
    %v904 = vunpack.c.h.b16 %v259
    %v905 = vpack.c.b16 %v517, %v513
    %v906 = vpack.c.b16 %v518, %v514
    %v907 = vpack.c.b16 %v519, %v515
    %v908 = vpack.c.b16 %v520, %v516
    %v909 = vpack.c.b16 %v525, %v521
    %v910 = vpack.c.b16 %v526, %v522
    %v911 = vpack.c.b16 %v527, %v523
    %v912 = vpack.c.b16 %v528, %v524
    %v913 = vpack.c.b16 %v533, %v529
    %v914 = vpack.c.b16 %v534, %v530
    %v915 = vpack.c.b16 %v535, %v531
    %v916 = vpack.c.b16 %v536, %v532
    %v917 = vpack.c.b16 %v541, %v537
    %v918 = vpack.c.b16 %v542, %v538
    %v919 = vpack.c.b16 %v543, %v539
    %v920 = vpack.c.b16 %v544, %v540
    %v921 = vpack.c.b16 %v549, %v545
    %v922 = vpack.c.b16 %v550, %v546
    %v923 = vpack.c.b16 %v551, %v547
    %v924 = vpack.c.b16 %v552, %v548
    %v925 = vpack.c.b16 %v557, %v553
    %v926 = vpack.c.b16 %v558, %v554
    %v927 = vpack.c.b16 %v559, %v555
    %v928 = vpack.c.b16 %v560, %v556
    %v929 = vpack.c.b16 %v565, %v561
    %v930 = vpack.c.b16 %v566, %v562
    %v931 = vpack.c.b16 %v567, %v563
    %v932 = vpack.c.b16 %v568, %v564
    %v933 = vpack.c.b16 %v573, %v569
    %v934 = vpack.c.b16 %v574, %v570
    %v935 = vpack.c.b16 %v575, %v571
    %v936 = vpack.c.b16 %v576, %v572
    %v937 = vpack.c.b16 %v581, %v577
    %v938 = vpack.c.b16 %v582, %v578
    %v939 = vpack.c.b16 %v583, %v579
    %v940 = vpack.c.b16 %v584, %v580
    %v941 = vpack.c.b16 %v589, %v585
    %v942 = vpack.c.b16 %v590, %v586
    %v943 = vpack.c.b16 %v591, %v587
    %v944 = vpack.c.b16 %v592, %v588
    %v945 = vpack.c.b16 %v597, %v593
    %v946 = vpack.c.b16 %v598, %v594
    %v947 = vpack.c.b16 %v599, %v595
    %v948 = vpack.c.b16 %v600, %v596
    %v949 = vpack.c.b16 %v605, %v601
    %v950 = vpack.c.b16 %v606, %v602
    %v951 = vpack.c.b16 %v607, %v603
    %v952 = vpack.c.b16 %v608, %v604
    %v953 = vpack.c.b16 %v613, %v609
    %v954 = vpack.c.b16 %v614, %v610
    %v955 = vpack.c.b16 %v615, %v611
    %v956 = vpack.c.b16 %v616, %v612
    %v957 = vpack.c.b16 %v621, %v617
    %v958 = vpack.c.b16 %v622, %v618
    %v959 = vpack.c.b16 %v623, %v619
    %v960 = vpack.c.b16 %v624, %v620
    %v961 = vpack.c.b16 %v629, %v625
    %v962 = vpack.c.b16 %v630, %v626
    %v963 = vpack.c.b16 %v631, %v627
    %v964 = vpack.c.b16 %v632, %v628
    %v965 = vpack.c.b16 %v637, %v633
    %v966 = vpack.c.b16 %v638, %v634
    %v967 = vpack.c.b16 %v639, %v635
    %v968 = vpack.c.b16 %v640, %v636
    %v969 = vpack.c.b16 %v645, %v641
    %v970 = vpack.c.b16 %v646, %v642
    %v971 = vpack.c.b16 %v647, %v643
    %v972 = vpack.c.b16 %v648, %v644
    %v973 = vpack.c.b16 %v653, %v649
    %v974 = vpack.c.b16 %v654, %v650
    %v975 = vpack.c.b16 %v655, %v651
    %v976 = vpack.c.b16 %v656, %v652
    %v977 = vpack.c.b16 %v661, %v657
    %v978 = vpack.c.b16 %v662, %v658
    %v979 = vpack.c.b16 %v663, %v659
    %v980 = vpack.c.b16 %v664, %v660
    %v981 = vpack.c.b16 %v669, %v665
    %v982 = vpack.c.b16 %v670, %v666
    %v983 = vpack.c.b16 %v671, %v667
    %v984 = vpack.c.b16 %v672, %v668
    %v985 = vpack.c.b16 %v677, %v673
    %v986 = vpack.c.b16 %v678, %v674
    %v987 = vpack.c.b16 %v679, %v675
    %v988 = vpack.c.b16 %v680, %v676
    %v989 = vpack.c.b16 %v685, %v681
    %v990 = vpack.c.b16 %v686, %v682
    %v991 = vpack.c.b16 %v687, %v683
    %v992 = vpack.c.b16 %v688, %v684
    %v993 = vpack.c.b16 %v693, %v689
    %v994 = vpack.c.b16 %v694, %v690
    %v995 = vpack.c.b16 %v695, %v691
    %v996 = vpack.c.b16 %v696, %v692
    %v997 = vpack.c.b16 %v701, %v697
    %v998 = vpack.c.b16 %v702, %v698
    %v999 = vpack.c.b16 %v703, %v699
    %v1000 = vpack.c.b16 %v704, %v700
    %v1001 = vpack.c.b16 %v709, %v705
    %v1002 = vpack.c.b16 %v710, %v706
    %v1003 = vpack.c.b16 %v711, %v707
    %v1004 = vpack.c.b16 %v712, %v708
    %v1005 = vpack.c.b16 %v717, %v713
    %v1006 = vpack.c.b16 %v718, %v714
    %v1007 = vpack.c.b16 %v719, %v715
    %v1008 = vpack.c.b16 %v720, %v716
    %v1009 = vpack.c.b16 %v725, %v721
    %v1010 = vpack.c.b16 %v726, %v722
    %v1011 = vpack.c.b16 %v727, %v723
    %v1012 = vpack.c.b16 %v728, %v724
    %v1013 = vpack.c.b16 %v733, %v729
    %v1014 = vpack.c.b16 %v734, %v730
    %v1015 = vpack.c.b16 %v735, %v731
    %v1016 = vpack.c.b16 %v736, %v732
    %v1017 = vpack.c.b16 %v741, %v737
    %v1018 = vpack.c.b16 %v742, %v738
    %v1019 = vpack.c.b16 %v743, %v739
    %v1020 = vpack.c.b16 %v744, %v740
    %v1021 = vpack.c.b16 %v749, %v745
    %v1022 = vpack.c.b16 %v750, %v746
    %v1023 = vpack.c.b16 %v751, %v747
    %v1024 = vpack.c.b16 %v752, %v748
    %v1025 = vpack.c.b16 %v757, %v753
    %v1026 = vpack.c.b16 %v758, %v754
    %v1027 = vpack.c.b16 %v759, %v755
    %v1028 = vpack.c.b16 %v760, %v756
    %v1029 = vpack.c.b16 %v765, %v761
    %v1030 = vpack.c.b16 %v766, %v762
    %v1031 = vpack.c.b16 %v767, %v763
    %v1032 = vpack.c.b16 %v768, %v764
    %v1033 = vpack.c.b16 %v773, %v769
    %v1034 = vpack.c.b16 %v774, %v770
    %v1035 = vpack.c.b16 %v775, %v771
    %v1036 = vpack.c.b16 %v776, %v772
    %v1037 = vpack.c.b16 %v781, %v777
    %v1038 = vpack.c.b16 %v782, %v778
    %v1039 = vpack.c.b16 %v783, %v779
    %v1040 = vpack.c.b16 %v784, %v780
    %v1041 = vpack.c.b16 %v789, %v785
    %v1042 = vpack.c.b16 %v790, %v786
    %v1043 = vpack.c.b16 %v791, %v787
    %v1044 = vpack.c.b16 %v792, %v788
    %v1045 = vpack.c.b16 %v797, %v793
    %v1046 = vpack.c.b16 %v798, %v794
    %v1047 = vpack.c.b16 %v799, %v795
    %v1048 = vpack.c.b16 %v800, %v796
    %v1049 = vpack.c.b16 %v805, %v801
    %v1050 = vpack.c.b16 %v806, %v802
    %v1051 = vpack.c.b16 %v807, %v803
    %v1052 = vpack.c.b16 %v808, %v804
    %v1053 = vpack.c.b16 %v813, %v809
    %v1054 = vpack.c.b16 %v814, %v810
    %v1055 = vpack.c.b16 %v815, %v811
    %v1056 = vpack.c.b16 %v816, %v812
    %v1057 = vpack.c.b16 %v821, %v817
    %v1058 = vpack.c.b16 %v822, %v818
    %v1059 = vpack.c.b16 %v823, %v819
    %v1060 = vpack.c.b16 %v824, %v820
    %v1061 = vpack.c.b16 %v829, %v825
    %v1062 = vpack.c.b16 %v830, %v826
    %v1063 = vpack.c.b16 %v831, %v827
    %v1064 = vpack.c.b16 %v832, %v828
    %v1065 = vpack.c.b16 %v837, %v833
    %v1066 = vpack.c.b16 %v838, %v834
    %v1067 = vpack.c.b16 %v839, %v835
    %v1068 = vpack.c.b16 %v840, %v836
    %v1069 = vpack.c.b16 %v845, %v841
    %v1070 = vpack.c.b16 %v846, %v842
    %v1071 = vpack.c.b16 %v847, %v843
    %v1072 = vpack.c.b16 %v848, %v844
    %v1073 = vpack.c.b16 %v853, %v849
    %v1074 = vpack.c.b16 %v854, %v850
    %v1075 = vpack.c.b16 %v855, %v851
    %v1076 = vpack.c.b16 %v856, %v852
    %v1077 = vpack.c.b16 %v861, %v857
    %v1078 = vpack.c.b16 %v862, %v858
    %v1079 = vpack.c.b16 %v863, %v859
    %v1080 = vpack.c.b16 %v864, %v860
    %v1081 = vpack.c.b16 %v869, %v865
    %v1082 = vpack.c.b16 %v870, %v866
    %v1083 = vpack.c.b16 %v871, %v867
    %v1084 = vpack.c.b16 %v872, %v868
    %v1085 = vpack.c.b16 %v877, %v873
    %v1086 = vpack.c.b16 %v878, %v874
    %v1087 = vpack.c.b16 %v879, %v875
    %v1088 = vpack.c.b16 %v880, %v876
    %v1089 = vpack.c.b16 %v885, %v881
    %v1090 = vpack.c.b16 %v886, %v882
    %v1091 = vpack.c.b16 %v887, %v883
    %v1092 = vpack.c.b16 %v888, %v884
    %v1093 = vpack.c.b16 %v893, %v889
    %v1094 = vpack.c.b16 %v894, %v890
    %v1095 = vpack.c.b16 %v895, %v891
    %v1096 = vpack.c.b16 %v896, %v892
    %v1097 = vpack.c.b16 %v901, %v897
    %v1098 = vpack.c.b16 %v902, %v898
    %v1099 = vpack.c.b16 %v903, %v899
    %v1100 = vpack.c.b16 %v904, %v900
    %vm1297 = vcmask 130048
    %v1299 = vsel %vm1297, %v310, 0
    %1301 = vmatprep.subr.bf16.mxu0 %v906
    %1302 = vmatpush1.bf16.msra.mxu0 %v905
    %1303 = vmatprep.subr.bf16.mxu0 %v910
    %1304 = vmatpush1.bf16.msra.mxu0 %v909
    %1305 = vmatprep.subr.bf16.mxu0 %v914
    %1306 = vmatpush1.bf16.msra.mxu0 %v913
    %1307 = vmatprep.subr.bf16.mxu0 %v918
    %1308 = vmatpush1.bf16.msra.mxu0 %v917
    %1309 = vmatprep.subr.bf16.mxu0 %v922
    %1310 = vmatpush1.bf16.msra.mxu0 %v921
    %1311 = vmatprep.subr.bf16.mxu0 %v926
    %1312 = vmatpush1.bf16.msra.mxu0 %v925
    %1313 = vmatprep.subr.bf16.mxu0 %v930
    %1314 = vmatpush1.bf16.msra.mxu0 %v929
    %1315 = vmatprep.subr.bf16.mxu0 %v934
    %1316 = vmatpush1.bf16.msra.mxu0 %v933
    %1317 = vmatprep.subr.bf16.mxu0 %v938
    %1318 = vmatpush1.bf16.msra.mxu0 %v937
    %1319 = vmatprep.subr.bf16.mxu0 %v942
    %1320 = vmatpush1.bf16.msra.mxu0 %v941
    %1321 = vmatprep.subr.bf16.mxu0 %v946
    %1322 = vmatpush1.bf16.msra.mxu0 %v945
    %1323 = vmatprep.subr.bf16.mxu0 %v950
    %1324 = vmatpush1.bf16.msra.mxu0 %v949
    %1325 = vmatprep.subr.bf16.mxu0 %v954
    %1326 = vmatpush1.bf16.msra.mxu0 %v953
    %1327 = vmatprep.subr.bf16.mxu0 %v958
    %1328 = vmatpush1.bf16.msra.mxu0 %v957
    %1329 = vmatprep.subr.bf16.mxu0 %v962
    %1330 = vmatpush1.bf16.msra.mxu0 %v961
    %1331 = vmatprep.subr.bf16.mxu0 %v966
    %1332 = vmatpush1.bf16.msra.mxu0 %v965
    %1333 = vmatprep.mubr.bf16.mxu0 %v305
    %1334 = vmatmul.mubr.bf16.gmra.mrb[0].mxu0 %v304
    %v1335 = vpop.f32.mrb[0].mxu0
    %v1336 = vadd.f32 %v265, %v1335
    %v1337 = vpop.f32.mrb[0].mxu0
    %v1338 = vadd.f32 %v269, %v1337
    %v1339 = vpop.f32.mrb[0].mxu0
    %v1340 = vadd.f32 %v265, %v1339
    %v1341 = vpop.f32.mrb[0].mxu0
    %v1342 = vadd.f32 %v269, %v1341
    %1343 = vdwg.mxu0
    %1344 = vmatprep.subr.bf16.mxu0 %v970
    %1345 = vmatpush1.bf16.msra.mxu0 %v969
    %1346 = vmatprep.subr.bf16.mxu0 %v974
    %1347 = vmatpush1.bf16.msra.mxu0 %v973
    %1348 = vmatprep.subr.bf16.mxu0 %v978
    %1349 = vmatpush1.bf16.msra.mxu0 %v977
    %1350 = vmatprep.subr.bf16.mxu0 %v982
    %1351 = vmatpush1.bf16.msra.mxu0 %v981
    %1352 = vmatprep.subr.bf16.mxu0 %v986
    %1353 = vmatpush1.bf16.msra.mxu0 %v985
    %1354 = vmatprep.subr.bf16.mxu0 %v990
    %1355 = vmatpush1.bf16.msra.mxu0 %v989
    %1356 = vmatprep.subr.bf16.mxu0 %v994
    %1357 = vmatpush1.bf16.msra.mxu0 %v993
    %1358 = vmatprep.subr.bf16.mxu0 %v998
    %1359 = vmatpush1.bf16.msra.mxu0 %v997
    %1360 = vmatprep.subr.bf16.mxu0 %v1002
    %1361 = vmatpush1.bf16.msra.mxu0 %v1001
    %1362 = vmatprep.subr.bf16.mxu0 %v1006
    %1363 = vmatpush1.bf16.msra.mxu0 %v1005
    %1364 = vmatprep.subr.bf16.mxu0 %v1010
    %1365 = vmatpush1.bf16.msra.mxu0 %v1009
    %1366 = vmatprep.subr.bf16.mxu0 %v1014
    %1367 = vmatpush1.bf16.msra.mxu0 %v1013
    %1368 = vmatprep.subr.bf16.mxu0 %v1018
    %1369 = vmatpush1.bf16.msra.mxu0 %v1017
    %1370 = vmatprep.subr.bf16.mxu0 %v1022
    %1371 = vmatpush1.bf16.msra.mxu0 %v1021
    %1372 = vmatprep.subr.bf16.mxu0 %v1026
    %1373 = vmatpush1.bf16.msra.mxu0 %v1025
    %1374 = vmatprep.subr.bf16.mxu0 %v1030
    %1375 = vmatpush1.bf16.msra.mxu0 %v1029
    %1376 = vmatprep.mubr.bf16.mxu0 %v307
    %1377 = vmatmul.mubr.bf16.gmra.mrb[0].mxu0 %v306
    %v1378 = vpop.f32.mrb[0].mxu0
    %v1379 = vadd.f32 %v1336, %v1378
    %v1380 = vpop.f32.mrb[0].mxu0
    %v1381 = vadd.f32 %v1338, %v1380
    %v1382 = vpop.f32.mrb[0].mxu0
    %v1383 = vadd.f32 %v1340, %v1382
    %v1384 = vpop.f32.mrb[0].mxu0
    %v1385 = vadd.f32 %v1342, %v1384
    %1386 = vdwg.mxu0
    %1387 = vmatprep.subr.bf16.mxu0 %v1034
    %1388 = vmatpush1.bf16.msra.mxu0 %v1033
    %1389 = vmatprep.subr.bf16.mxu0 %v1038
    %1390 = vmatpush1.bf16.msra.mxu0 %v1037
    %1391 = vmatprep.subr.bf16.mxu0 %v1042
    %1392 = vmatpush1.bf16.msra.mxu0 %v1041
    %1393 = vmatprep.subr.bf16.mxu0 %v1046
    %1394 = vmatpush1.bf16.msra.mxu0 %v1045
    %1395 = vmatprep.subr.bf16.mxu0 %v1050
    %1396 = vmatpush1.bf16.msra.mxu0 %v1049
    %1397 = vmatprep.subr.bf16.mxu0 %v1054
    %1398 = vmatpush1.bf16.msra.mxu0 %v1053
    %1399 = vmatprep.subr.bf16.mxu0 %v1058
    %1400 = vmatpush1.bf16.msra.mxu0 %v1057
    %1401 = vmatprep.subr.bf16.mxu0 %v1062
    %1402 = vmatpush1.bf16.msra.mxu0 %v1061
    %1403 = vmatprep.subr.bf16.mxu0 %v1066
    %1404 = vmatpush1.bf16.msra.mxu0 %v1065
    %1405 = vmatprep.subr.bf16.mxu0 %v1070
    %1406 = vmatpush1.bf16.msra.mxu0 %v1069
    %1407 = vmatprep.subr.bf16.mxu0 %v1074
    %1408 = vmatpush1.bf16.msra.mxu0 %v1073
    %1409 = vmatprep.subr.bf16.mxu0 %v1078
    %1410 = vmatpush1.bf16.msra.mxu0 %v1077
    %1411 = vmatprep.subr.bf16.mxu0 %v1082
    %1412 = vmatpush1.bf16.msra.mxu0 %v1081
    %1413 = vmatprep.subr.bf16.mxu0 %v1086
    %1414 = vmatpush1.bf16.msra.mxu0 %v1085
    %1415 = vmatprep.subr.bf16.mxu0 %v1090
    %1416 = vmatpush1.bf16.msra.mxu0 %v1089
    %1417 = vmatprep.subr.bf16.mxu0 %v1094
    %1418 = vmatpush1.bf16.msra.mxu0 %v1093
    %1419 = vmatprep.mubr.bf16.mxu0 %v309
    %1420 = vmatmul.mubr.bf16.gmra.mrb[0].mxu0 %v308
    %v1421 = vpop.f32.mrb[0].mxu0
    %v1422 = vadd.f32 %v1379, %v1421
    %v1423 = vpop.f32.mrb[0].mxu0
    %v1424 = vadd.f32 %v1381, %v1423
    %v1425 = vpop.f32.mrb[0].mxu0
    %v1426 = vadd.f32 %v1383, %v1425
    %v1427 = vpop.f32.mrb[0].mxu0
    %v1428 = vadd.f32 %v1385, %v1427
    %1429 = vdwg.mxu0
    %1430 = vmatprep.subr.bf16.mxu0 %v1098
    %1431 = vmatpush1.bf16.msra.mxu0 %v1097
    %1432 = vmatprep.subr.bf16.mxu0 0
    %1433 = vmatpush1.bf16.msra.mxu0 0
    %1434 = vmatprep.subr.bf16.mxu0 0
    %1435 = vmatpush1.bf16.msra.mxu0 0
    %1436 = vmatprep.subr.bf16.mxu0 0
    %1437 = vmatpush1.bf16.msra.mxu0 0
    %1438 = vmatprep.subr.bf16.mxu0 0
    %1439 = vmatpush1.bf16.msra.mxu0 0
    %1440 = vmatprep.subr.bf16.mxu0 0
    %1441 = vmatpush1.bf16.msra.mxu0 0
    %1442 = vmatprep.subr.bf16.mxu0 0
    %1443 = vmatpush1.bf16.msra.mxu0 0
    %1444 = vmatprep.subr.bf16.mxu0 0
    %1445 = vmatpush1.bf16.msra.mxu0 0
    %1446 = vmatprep.subr.bf16.mxu0 0
    %1447 = vmatpush1.bf16.msra.mxu0 0
    %1448 = vmatprep.subr.bf16.mxu0 0
    %1449 = vmatpush1.bf16.msra.mxu0 0
    %1450 = vmatprep.subr.bf16.mxu0 0
    %1451 = vmatpush1.bf16.msra.mxu0 0
    %1452 = vmatprep.subr.bf16.mxu0 0
    %1453 = vmatpush1.bf16.msra.mxu0 0
    %1454 = vmatprep.subr.bf16.mxu0 0
    %1455 = vmatpush1.bf16.msra.mxu0 0
    %1456 = vmatprep.subr.bf16.mxu0 0
    %1457 = vmatpush1.bf16.msra.mxu0 0
    %1458 = vmatprep.subr.bf16.mxu0 0
    %1459 = vmatpush1.bf16.msra.mxu0 0
    %1460 = vmatprep.subr.bf16.mxu0 0
    %1461 = vmatpush1.bf16.msra.mxu0 0
    %1462 = vmatprep.mubr.bf16.mxu0 0
    %1463 = vmatmul.mubr.bf16.gmra.mrb[0].mxu0 %v1299
    %v1464 = vpop.f32.mrb[0].mxu0
    %v1465 = vadd.f32 %v1422, %v1464
    %v1466 = vpop.f32.mrb[0].mxu0
    %v1467 = vadd.f32 %v1424, %v1466
    %v1468 = vpop.f32.mrb[0].mxu0
    %v1469 = vadd.f32 %v1426, %v1468
    %v1470 = vpop.f32.mrb[0].mxu0
    %v1471 = vadd.f32 %v1428, %v1470
    %1472 = vdwg.mxu0
    %1473 = vmatprep.subr.bf16.mxu0 %v908
    %1474 = vmatpush1.bf16.msra.mxu0 %v907
    %1475 = vmatprep.subr.bf16.mxu0 %v912
    %1476 = vmatpush1.bf16.msra.mxu0 %v911
    %1477 = vmatprep.subr.bf16.mxu0 %v916
    %1478 = vmatpush1.bf16.msra.mxu0 %v915
    %1479 = vmatprep.subr.bf16.mxu0 %v920
    %1480 = vmatpush1.bf16.msra.mxu0 %v919
    %1481 = vmatprep.subr.bf16.mxu0 %v924
    %1482 = vmatpush1.bf16.msra.mxu0 %v923
    %1483 = vmatprep.subr.bf16.mxu0 %v928
    %1484 = vmatpush1.bf16.msra.mxu0 %v927
    %1485 = vmatprep.subr.bf16.mxu0 %v932
    %1486 = vmatpush1.bf16.msra.mxu0 %v931
    %1487 = vmatprep.subr.bf16.mxu0 %v936
    %1488 = vmatpush1.bf16.msra.mxu0 %v935
    %1489 = vmatprep.subr.bf16.mxu0 %v940
    %1490 = vmatpush1.bf16.msra.mxu0 %v939
    %1491 = vmatprep.subr.bf16.mxu0 %v944
    %1492 = vmatpush1.bf16.msra.mxu0 %v943
    %1493 = vmatprep.subr.bf16.mxu0 %v948
    %1494 = vmatpush1.bf16.msra.mxu0 %v947
    %1495 = vmatprep.subr.bf16.mxu0 %v952
    %1496 = vmatpush1.bf16.msra.mxu0 %v951
    %1497 = vmatprep.subr.bf16.mxu0 %v956
    %1498 = vmatpush1.bf16.msra.mxu0 %v955
    %1499 = vmatprep.subr.bf16.mxu0 %v960
    %1500 = vmatpush1.bf16.msra.mxu0 %v959
    %1501 = vmatprep.subr.bf16.mxu0 %v964
    %1502 = vmatpush1.bf16.msra.mxu0 %v963
    %1503 = vmatprep.subr.bf16.mxu0 %v968
    %1504 = vmatpush1.bf16.msra.mxu0 %v967
    %1505 = vmatprep.mubr.bf16.mxu0 %v305
    %1506 = vmatmul.mubr.bf16.gmra.mrb[0].mxu0 %v304
    %v1507 = vpop.f32.mrb[0].mxu0
    %v1508 = vadd.f32 %v273, %v1507
    %v1509 = vpop.f32.mrb[0].mxu0
    %v1510 = vadd.f32 %v277, %v1509
    %v1511 = vpop.f32.mrb[0].mxu0
    %v1512 = vadd.f32 %v273, %v1511
    %v1513 = vpop.f32.mrb[0].mxu0
    %v1514 = vadd.f32 %v277, %v1513
    %1515 = vdwg.mxu0
    %1516 = vmatprep.subr.bf16.mxu0 %v972
    %1517 = vmatpush1.bf16.msra.mxu0 %v971
    %1518 = vmatprep.subr.bf16.mxu0 %v976
    %1519 = vmatpush1.bf16.msra.mxu0 %v975
    %1520 = vmatprep.subr.bf16.mxu0 %v980
    %1521 = vmatpush1.bf16.msra.mxu0 %v979
    %1522 = vmatprep.subr.bf16.mxu0 %v984
    %1523 = vmatpush1.bf16.msra.mxu0 %v983
    %1524 = vmatprep.subr.bf16.mxu0 %v988
    %1525 = vmatpush1.bf16.msra.mxu0 %v987
    %1526 = vmatprep.subr.bf16.mxu0 %v992
    %1527 = vmatpush1.bf16.msra.mxu0 %v991
    %1528 = vmatprep.subr.bf16.mxu0 %v996
    %1529 = vmatpush1.bf16.msra.mxu0 %v995
    %1530 = vmatprep.subr.bf16.mxu0 %v1000
    %1531 = vmatpush1.bf16.msra.mxu0 %v999
    %1532 = vmatprep.subr.bf16.mxu0 %v1004
    %1533 = vmatpush1.bf16.msra.mxu0 %v1003
    %1534 = vmatprep.subr.bf16.mxu0 %v1008
    %1535 = vmatpush1.bf16.msra.mxu0 %v1007
    %1536 = vmatprep.subr.bf16.mxu0 %v1012
    %1537 = vmatpush1.bf16.msra.mxu0 %v1011
    %1538 = vmatprep.subr.bf16.mxu0 %v1016
    %1539 = vmatpush1.bf16.msra.mxu0 %v1015
    %1540 = vmatprep.subr.bf16.mxu0 %v1020
    %1541 = vmatpush1.bf16.msra.mxu0 %v1019
    %1542 = vmatprep.subr.bf16.mxu0 %v1024
    %1543 = vmatpush1.bf16.msra.mxu0 %v1023
    %1544 = vmatprep.subr.bf16.mxu0 %v1028
    %1545 = vmatpush1.bf16.msra.mxu0 %v1027
    %1546 = vmatprep.subr.bf16.mxu0 %v1032
    %1547 = vmatpush1.bf16.msra.mxu0 %v1031
    %1548 = vmatprep.mubr.bf16.mxu0 %v307
    %1549 = vmatmul.mubr.bf16.gmra.mrb[0].mxu0 %v306
    %v1550 = vpop.f32.mrb[0].mxu0
    %v1551 = vadd.f32 %v1508, %v1550
    %v1552 = vpop.f32.mrb[0].mxu0
    %v1553 = vadd.f32 %v1510, %v1552
    %v1554 = vpop.f32.mrb[0].mxu0
    %v1555 = vadd.f32 %v1512, %v1554
    %v1556 = vpop.f32.mrb[0].mxu0
    %v1557 = vadd.f32 %v1514, %v1556
    %1558 = vdwg.mxu0
    %1559 = vmatprep.subr.bf16.mxu0 %v1036
    %1560 = vmatpush1.bf16.msra.mxu0 %v1035
    %1561 = vmatprep.subr.bf16.mxu0 %v1040
    %1562 = vmatpush1.bf16.msra.mxu0 %v1039
    %1563 = vmatprep.subr.bf16.mxu0 %v1044
    %1564 = vmatpush1.bf16.msra.mxu0 %v1043
    %1565 = vmatprep.subr.bf16.mxu0 %v1048
    %1566 = vmatpush1.bf16.msra.mxu0 %v1047
    %1567 = vmatprep.subr.bf16.mxu0 %v1052
    %1568 = vmatpush1.bf16.msra.mxu0 %v1051
    %1569 = vmatprep.subr.bf16.mxu0 %v1056
    %1570 = vmatpush1.bf16.msra.mxu0 %v1055
    %1571 = vmatprep.subr.bf16.mxu0 %v1060
    %1572 = vmatpush1.bf16.msra.mxu0 %v1059
    %1573 = vmatprep.subr.bf16.mxu0 %v1064
    %1574 = vmatpush1.bf16.msra.mxu0 %v1063
    %1575 = vmatprep.subr.bf16.mxu0 %v1068
    %1576 = vmatpush1.bf16.msra.mxu0 %v1067
    %1577 = vmatprep.subr.bf16.mxu0 %v1072
    %1578 = vmatpush1.bf16.msra.mxu0 %v1071
    %1579 = vmatprep.subr.bf16.mxu0 %v1076
    %1580 = vmatpush1.bf16.msra.mxu0 %v1075
    %1581 = vmatprep.subr.bf16.mxu0 %v1080
    %1582 = vmatpush1.bf16.msra.mxu0 %v1079
    %1583 = vmatprep.subr.bf16.mxu0 %v1084
    %1584 = vmatpush1.bf16.msra.mxu0 %v1083
    %1585 = vmatprep.subr.bf16.mxu0 %v1088
    %1586 = vmatpush1.bf16.msra.mxu0 %v1087
    %1587 = vmatprep.subr.bf16.mxu0 %v1092
    %1588 = vmatpush1.bf16.msra.mxu0 %v1091
    %1589 = vmatprep.subr.bf16.mxu0 %v1096
    %1590 = vmatpush1.bf16.msra.mxu0 %v1095
    %1591 = vmatprep.mubr.bf16.mxu0 %v309
    %1592 = vmatmul.mubr.bf16.gmra.mrb[0].mxu0 %v308
    %v1593 = vpop.f32.mrb[0].mxu0
    %v1594 = vadd.f32 %v1551, %v1593
    %v1595 = vpop.f32.mrb[0].mxu0
    %v1596 = vadd.f32 %v1553, %v1595
    %v1597 = vpop.f32.mrb[0].mxu0
    %v1598 = vadd.f32 %v1555, %v1597
    %v1599 = vpop.f32.mrb[0].mxu0
    %v1600 = vadd.f32 %v1557, %v1599
    %1601 = vdwg.mxu0
    %1602 = vmatprep.subr.bf16.mxu0 %v1100
    %1603 = vmatpush1.bf16.msra.mxu0 %v1099
    %1604 = vmatprep.subr.bf16.mxu0 0
    %1605 = vmatpush1.bf16.msra.mxu0 0
    %1606 = vmatprep.subr.bf16.mxu0 0
    %1607 = vmatpush1.bf16.msra.mxu0 0
    %1608 = vmatprep.subr.bf16.mxu0 0
    %1609 = vmatpush1.bf16.msra.mxu0 0
    %1610 = vmatprep.subr.bf16.mxu0 0
    %1611 = vmatpush1.bf16.msra.mxu0 0
    %1612 = vmatprep.subr.bf16.mxu0 0
    %1613 = vmatpush1.bf16.msra.mxu0 0
    %1614 = vmatprep.subr.bf16.mxu0 0
    %1615 = vmatpush1.bf16.msra.mxu0 0
    %1616 = vmatprep.subr.bf16.mxu0 0
    %1617 = vmatpush1.bf16.msra.mxu0 0
    %1618 = vmatprep.subr.bf16.mxu0 0
    %1619 = vmatpush1.bf16.msra.mxu0 0
    %1620 = vmatprep.subr.bf16.mxu0 0
    %1621 = vmatpush1.bf16.msra.mxu0 0
    %1622 = vmatprep.subr.bf16.mxu0 0
    %1623 = vmatpush1.bf16.msra.mxu0 0
    %1624 = vmatprep.subr.bf16.mxu0 0
    %1625 = vmatpush1.bf16.msra.mxu0 0
    %1626 = vmatprep.subr.bf16.mxu0 0
    %1627 = vmatpush1.bf16.msra.mxu0 0
    %1628 = vmatprep.subr.bf16.mxu0 0
    %1629 = vmatpush1.bf16.msra.mxu0 0
    %1630 = vmatprep.subr.bf16.mxu0 0
    %1631 = vmatpush1.bf16.msra.mxu0 0
    %1632 = vmatprep.subr.bf16.mxu0 0
    %1633 = vmatpush1.bf16.msra.mxu0 0
    %1634 = vmatprep.mubr.bf16.mxu0 0
    %1635 = vmatmul.mubr.bf16.gmra.mrb[0].mxu0 %v1299
    %v1636 = vpop.f32.mrb[0].mxu0
    %v1637 = vadd.f32 %v1594, %v1636
    %v1638 = vpop.f32.mrb[0].mxu0
    %v1639 = vadd.f32 %v1596, %v1638
    %v1640 = vpop.f32.mrb[0].mxu0
    %v1641 = vadd.f32 %v1598, %v1640
    %v1642 = vpop.f32.mrb[0].mxu0
    %v1643 = vadd.f32 %v1600, %v1642
    %1644 = vdwg.mxu0
    %v1645 = vpack.c.bf16 %v1469, %v1465
    %v1646 = vpack.c.bf16 %v1471, %v1467
    %v1647 = vpack.c.bf16 %v1641, %v1637
    %v1648 = vpack.c.bf16 %v1643, %v1639
    %v1649 = vmul.bf16 %v1645, 1056980736
    %v1650 = vmul.bf16 %v1646, 1056980736
    %v1651 = vmul.bf16 %v1647, 1056980736
    %v1652 = vmul.bf16 %v1648, 1056980736
    %v1653 = vtanh.bf16.pop %v1649
    %v1654 = vtanh.bf16.pop %v1650
    %v1655 = vtanh.bf16.pop %v1651
    %v1656 = vtanh.bf16.pop %v1652
    %v1657 = vmul.bf16 %v1653, 1056980736
    %v1658 = vmul.bf16 %v1654, 1056980736
    %v1659 = vmul.bf16 %v1655, 1056980736
    %v1660 = vmul.bf16 %v1656, 1056980736
    %v1661 = vadd.bf16 %v1657, 1056980736
    %v1662 = vadd.bf16 %v1658, 1056980736
    %v1663 = vadd.bf16 %v1659, 1056980736
    %v1664 = vadd.bf16 %v1660, 1056980736
    %v1665 = vld [vmem:[%s3] sm:$0xff]
    %v1666 = vld [vmem:[%s3 + $0x8] sm:$0xff]
    %v1667 = vld [vmem:[%s3 + $0x10] sm:$0xff]
    %v1668 = vld [vmem:[%s3 + $0x18] sm:$0xff]
    %v1669 = vld [vmem:[%s3 + $0x20] sm:$0xff]
    %v1670 = vld [vmem:[%s3 + $0x28] sm:$0xff]
    %v1671 = vld [vmem:[%s3 + $0x30] sm:$0xff]
    %v1672 = vld [vmem:[%s3 + $0x38] sm:$0xff]
    %v1673 = vld [vmem:[%s3 + $0x40] sm:$0xff]
    %v1674 = vld [vmem:[%s3 + $0x48] sm:$0xff]
    %v1675 = vld [vmem:[%s3 + $0x50] sm:$0xff]
    %v1676 = vld [vmem:[%s3 + $0x58] sm:$0xff]
    %v1677 = vld [vmem:[%s3 + $0x60] sm:$0xff]
    %v1678 = vld [vmem:[%s3 + $0x68] sm:$0xff]
    %v1679 = vld [vmem:[%s3 + $0x70] sm:$0xff]
    %v1680 = vld [vmem:[%s3 + $0x78] sm:$0xff]
    %v1681 = vld [vmem:[%s3 + $0x80] sm:$0xff]
    %v1682 = vld [vmem:[%s3 + $0x88] sm:$0xff]
    %v1683 = vld [vmem:[%s3 + $0x90] sm:$0xff]
    %v1684 = vld [vmem:[%s3 + $0x98] sm:$0xff]
    %v1685 = vld [vmem:[%s3 + $0xa0] sm:$0xff]
    %v1686 = vld [vmem:[%s3 + $0xa8] sm:$0xff]
    %v1687 = vld [vmem:[%s3 + $0xb0] sm:$0xff]
    %v1688 = vld [vmem:[%s3 + $0xb8] sm:$0xff]
    %v1689 = vld [vmem:[%s3 + $0xc0] sm:$0xff]
    %v1690 = vld [vmem:[%s3 + $0xc8] sm:$0xff]
    %v1691 = vld [vmem:[%s3 + $0xd0] sm:$0xff]
    %v1692 = vld [vmem:[%s3 + $0xd8] sm:$0xff]
    %v1693 = vld [vmem:[%s3 + $0xe0] sm:$0xff]
    %v1694 = vld [vmem:[%s3 + $0xe8] sm:$0xff]
    %v1695 = vld [vmem:[%s3 + $0xf0] sm:$0xff]
    %v1696 = vld [vmem:[%s3 + $0xf8] sm:$0xff]
    %v1697 = vld [vmem:[%s3 + $0x100] sm:$0xff]
    %v1698 = vld [vmem:[%s3 + $0x108] sm:$0xff]
    %v1699 = vld [vmem:[%s3 + $0x110] sm:$0xff]
    %v1700 = vld [vmem:[%s3 + $0x118] sm:$0xff]
    %v1701 = vld [vmem:[%s3 + $0x120] sm:$0xff]
    %v1702 = vld [vmem:[%s3 + $0x128] sm:$0xff]
    %v1703 = vld [vmem:[%s3 + $0x130] sm:$0xff]
    %v1704 = vld [vmem:[%s3 + $0x138] sm:$0xff]
    %v1705 = vld [vmem:[%s3 + $0x140] sm:$0xff]
    %v1706 = vld [vmem:[%s3 + $0x148] sm:$0xff]
    %v1707 = vld [vmem:[%s3 + $0x150] sm:$0xff]
    %v1708 = vld [vmem:[%s3 + $0x158] sm:$0xff]
    %v1709 = vld [vmem:[%s3 + $0x160] sm:$0xff]
    %v1710 = vld [vmem:[%s3 + $0x168] sm:$0xff]
    %v1711 = vld [vmem:[%s3 + $0x170] sm:$0xff]
    %v1712 = vld [vmem:[%s3 + $0x178] sm:$0xff]
    %v1713 = vld [vmem:[%s3 + $0x180] sm:$0xff]
    %v1714 = vld [vmem:[%s3 + $0x188] sm:$0xff]
    %v1715 = vld [vmem:[%s3 + $0x190] sm:$0xff]
    %v1716 = vld [vmem:[%s3 + $0x198] sm:$0xff]
    %v1717 = vld [vmem:[%s3 + $0x1a0] sm:$0xff]
    %v1718 = vld [vmem:[%s3 + $0x1a8] sm:$0xff]
    %v1719 = vld [vmem:[%s3 + $0x1b0] sm:$0xff]
    %v1720 = vld [vmem:[%s3 + $0x1b8] sm:$0xff]
    %v1721 = vld [vmem:[%s3 + $0x1c0] sm:$0xff]
    %v1722 = vld [vmem:[%s3 + $0x1c8] sm:$0xff]
    %v1723 = vld [vmem:[%s3 + $0x1d0] sm:$0xff]
    %v1724 = vld [vmem:[%s3 + $0x1d8] sm:$0xff]
    %v1725 = vld [vmem:[%s3 + $0x1e0] sm:$0xff]
    %v1726 = vld [vmem:[%s3 + $0x1e8] sm:$0xff]
    %v1727 = vld [vmem:[%s3 + $0x1f0] sm:$0xff]
    %v1728 = vld [vmem:[%s3 + $0x1f8] sm:$0xff]
    %v1729 = vld [vmem:[%s4] sm:$0x3]
    %v1731 = vlaneseq
    %v1732 = vshrl.u32 %v1731, 7
    %v1733 = vsub.s32 0, %v1732
    %v1734 = vrot.slane %v1729, %v1733
    %v1735 = vlaneseq
    %v1736 = vshrl.u32 %v1735, 7
    %v1737 = vsub.s32 1, %v1736
    %v1738 = vrot.slane %v1729, %v1737
    %v1805 = vunpack.c.l.b16 %v1665
    %v1806 = vunpack.c.h.b16 %v1665
    %v1807 = vunpack.c.l.b16 %v1666
    %v1808 = vunpack.c.h.b16 %v1666
    %v1809 = vunpack.c.l.b16 %v1667
    %v1810 = vunpack.c.h.b16 %v1667
    %v1811 = vunpack.c.l.b16 %v1668
    %v1812 = vunpack.c.h.b16 %v1668
    %v1813 = vunpack.c.l.b16 %v1669
    %v1814 = vunpack.c.h.b16 %v1669
    %v1815 = vunpack.c.l.b16 %v1670
    %v1816 = vunpack.c.h.b16 %v1670
    %v1817 = vunpack.c.l.b16 %v1671
    %v1818 = vunpack.c.h.b16 %v1671
    %v1819 = vunpack.c.l.b16 %v1672
    %v1820 = vunpack.c.h.b16 %v1672
    %v1821 = vunpack.c.l.b16 %v1673
    %v1822 = vunpack.c.h.b16 %v1673
    %v1823 = vunpack.c.l.b16 %v1674
    %v1824 = vunpack.c.h.b16 %v1674
    %v1825 = vunpack.c.l.b16 %v1675
    %v1826 = vunpack.c.h.b16 %v1675
    %v1827 = vunpack.c.l.b16 %v1676
    %v1828 = vunpack.c.h.b16 %v1676
    %v1829 = vunpack.c.l.b16 %v1677
    %v1830 = vunpack.c.h.b16 %v1677
    %v1831 = vunpack.c.l.b16 %v1678
    %v1832 = vunpack.c.h.b16 %v1678
    %v1833 = vunpack.c.l.b16 %v1679
    %v1834 = vunpack.c.h.b16 %v1679
    %v1835 = vunpack.c.l.b16 %v1680
    %v1836 = vunpack.c.h.b16 %v1680
    %v1837 = vunpack.c.l.b16 %v1681
    %v1838 = vunpack.c.h.b16 %v1681
    %v1839 = vunpack.c.l.b16 %v1682
    %v1840 = vunpack.c.h.b16 %v1682
    %v1841 = vunpack.c.l.b16 %v1683
    %v1842 = vunpack.c.h.b16 %v1683
    %v1843 = vunpack.c.l.b16 %v1684
    %v1844 = vunpack.c.h.b16 %v1684
    %v1845 = vunpack.c.l.b16 %v1685
    %v1846 = vunpack.c.h.b16 %v1685
    %v1847 = vunpack.c.l.b16 %v1686
    %v1848 = vunpack.c.h.b16 %v1686
    %v1849 = vunpack.c.l.b16 %v1687
    %v1850 = vunpack.c.h.b16 %v1687
    %v1851 = vunpack.c.l.b16 %v1688
    %v1852 = vunpack.c.h.b16 %v1688
    %v1853 = vunpack.c.l.b16 %v1689
    %v1854 = vunpack.c.h.b16 %v1689
    %v1855 = vunpack.c.l.b16 %v1690
    %v1856 = vunpack.c.h.b16 %v1690
    %v1857 = vunpack.c.l.b16 %v1691
    %v1858 = vunpack.c.h.b16 %v1691
    %v1859 = vunpack.c.l.b16 %v1692
    %v1860 = vunpack.c.h.b16 %v1692
    %v1861 = vunpack.c.l.b16 %v1693
    %v1862 = vunpack.c.h.b16 %v1693
    %v1863 = vunpack.c.l.b16 %v1694
    %v1864 = vunpack.c.h.b16 %v1694
    %v1865 = vunpack.c.l.b16 %v1695
    %v1866 = vunpack.c.h.b16 %v1695
    %v1867 = vunpack.c.l.b16 %v1696
    %v1868 = vunpack.c.h.b16 %v1696
    %v1869 = vunpack.c.l.b16 %v1697
    %v1870 = vunpack.c.h.b16 %v1697
    %v1871 = vunpack.c.l.b16 %v1698
    %v1872 = vunpack.c.h.b16 %v1698
    %v1873 = vunpack.c.l.b16 %v1699
    %v1874 = vunpack.c.h.b16 %v1699
    %v1875 = vunpack.c.l.b16 %v1700
    %v1876 = vunpack.c.h.b16 %v1700
    %v1877 = vunpack.c.l.b16 %v1701
    %v1878 = vunpack.c.h.b16 %v1701
    %v1879 = vunpack.c.l.b16 %v1702
    %v1880 = vunpack.c.h.b16 %v1702
    %v1881 = vunpack.c.l.b16 %v1703
    %v1882 = vunpack.c.h.b16 %v1703
    %v1883 = vunpack.c.l.b16 %v1704
    %v1884 = vunpack.c.h.b16 %v1704
    %v1885 = vunpack.c.l.b16 %v1705
    %v1886 = vunpack.c.h.b16 %v1705
    %v1887 = vunpack.c.l.b16 %v1706
    %v1888 = vunpack.c.h.b16 %v1706
    %v1889 = vunpack.c.l.b16 %v1707
    %v1890 = vunpack.c.h.b16 %v1707
    %v1891 = vunpack.c.l.b16 %v1708
    %v1892 = vunpack.c.h.b16 %v1708
    %v1893 = vunpack.c.l.b16 %v1709
    %v1894 = vunpack.c.h.b16 %v1709
    %v1895 = vunpack.c.l.b16 %v1710
    %v1896 = vunpack.c.h.b16 %v1710
    %v1897 = vunpack.c.l.b16 %v1711
    %v1898 = vunpack.c.h.b16 %v1711
    %v1899 = vunpack.c.l.b16 %v1712
    %v1900 = vunpack.c.h.b16 %v1712
    %v1901 = vunpack.c.l.b16 %v1713
    %v1902 = vunpack.c.h.b16 %v1713
    %v1903 = vunpack.c.l.b16 %v1714
    %v1904 = vunpack.c.h.b16 %v1714
    %v1905 = vunpack.c.l.b16 %v1715
    %v1906 = vunpack.c.h.b16 %v1715
    %v1907 = vunpack.c.l.b16 %v1716
    %v1908 = vunpack.c.h.b16 %v1716
    %v1909 = vunpack.c.l.b16 %v1717
    %v1910 = vunpack.c.h.b16 %v1717
    %v1911 = vunpack.c.l.b16 %v1718
    %v1912 = vunpack.c.h.b16 %v1718
    %v1913 = vunpack.c.l.b16 %v1719
    %v1914 = vunpack.c.h.b16 %v1719
    %v1915 = vunpack.c.l.b16 %v1720
    %v1916 = vunpack.c.h.b16 %v1720
    %v1917 = vunpack.c.l.b16 %v1721
    %v1918 = vunpack.c.h.b16 %v1721
    %v1919 = vunpack.c.l.b16 %v1722
    %v1920 = vunpack.c.h.b16 %v1722
    %v1921 = vunpack.c.l.b16 %v1723
    %v1922 = vunpack.c.h.b16 %v1723
    %v1923 = vunpack.c.l.b16 %v1724
    %v1924 = vunpack.c.h.b16 %v1724
    %v1925 = vunpack.c.l.b16 %v1725
    %v1926 = vunpack.c.h.b16 %v1725
    %v1927 = vunpack.c.l.b16 %v1726
    %v1928 = vunpack.c.h.b16 %v1726
    %v1929 = vunpack.c.l.b16 %v1727
    %v1930 = vunpack.c.h.b16 %v1727
    %v1931 = vunpack.c.l.b16 %v1728
    %v1932 = vunpack.c.h.b16 %v1728
    %v1933 = vpack.c.b16 %v1807, %v1805
    %v1934 = vpack.c.b16 %v1808, %v1806
    %v1935 = vpack.c.b16 %v1811, %v1809
    %v1936 = vpack.c.b16 %v1812, %v1810
    %v1937 = vpack.c.b16 %v1815, %v1813
    %v1938 = vpack.c.b16 %v1816, %v1814
    %v1939 = vpack.c.b16 %v1819, %v1817
    %v1940 = vpack.c.b16 %v1820, %v1818
    %v1941 = vpack.c.b16 %v1823, %v1821
    %v1942 = vpack.c.b16 %v1824, %v1822
    %v1943 = vpack.c.b16 %v1827, %v1825
    %v1944 = vpack.c.b16 %v1828, %v1826
    %v1945 = vpack.c.b16 %v1831, %v1829
    %v1946 = vpack.c.b16 %v1832, %v1830
    %v1947 = vpack.c.b16 %v1835, %v1833
    %v1948 = vpack.c.b16 %v1836, %v1834
    %v1949 = vpack.c.b16 %v1839, %v1837
    %v1950 = vpack.c.b16 %v1840, %v1838
    %v1951 = vpack.c.b16 %v1843, %v1841
    %v1952 = vpack.c.b16 %v1844, %v1842
    %v1953 = vpack.c.b16 %v1847, %v1845
    %v1954 = vpack.c.b16 %v1848, %v1846
    %v1955 = vpack.c.b16 %v1851, %v1849
    %v1956 = vpack.c.b16 %v1852, %v1850
    %v1957 = vpack.c.b16 %v1855, %v1853
    %v1958 = vpack.c.b16 %v1856, %v1854
    %v1959 = vpack.c.b16 %v1859, %v1857
    %v1960 = vpack.c.b16 %v1860, %v1858
    %v1961 = vpack.c.b16 %v1863, %v1861
    %v1962 = vpack.c.b16 %v1864, %v1862
    %v1963 = vpack.c.b16 %v1867, %v1865
    %v1964 = vpack.c.b16 %v1868, %v1866
    %v1965 = vpack.c.b16 %v1871, %v1869
    %v1966 = vpack.c.b16 %v1872, %v1870
    %v1967 = vpack.c.b16 %v1875, %v1873
    %v1968 = vpack.c.b16 %v1876, %v1874
    %v1969 = vpack.c.b16 %v1879, %v1877
    %v1970 = vpack.c.b16 %v1880, %v1878
    %v1971 = vpack.c.b16 %v1883, %v1881
    %v1972 = vpack.c.b16 %v1884, %v1882
    %v1973 = vpack.c.b16 %v1887, %v1885
    %v1974 = vpack.c.b16 %v1888, %v1886
    %v1975 = vpack.c.b16 %v1891, %v1889
    %v1976 = vpack.c.b16 %v1892, %v1890
    %v1977 = vpack.c.b16 %v1895, %v1893
    %v1978 = vpack.c.b16 %v1896, %v1894
    %v1979 = vpack.c.b16 %v1899, %v1897
    %v1980 = vpack.c.b16 %v1900, %v1898
    %v1981 = vpack.c.b16 %v1903, %v1901
    %v1982 = vpack.c.b16 %v1904, %v1902
    %v1983 = vpack.c.b16 %v1907, %v1905
    %v1984 = vpack.c.b16 %v1908, %v1906
    %v1985 = vpack.c.b16 %v1911, %v1909
    %v1986 = vpack.c.b16 %v1912, %v1910
    %v1987 = vpack.c.b16 %v1915, %v1913
    %v1988 = vpack.c.b16 %v1916, %v1914
    %v1989 = vpack.c.b16 %v1919, %v1917
    %v1990 = vpack.c.b16 %v1920, %v1918
    %v1991 = vpack.c.b16 %v1923, %v1921
    %v1992 = vpack.c.b16 %v1924, %v1922
    %v1993 = vpack.c.b16 %v1927, %v1925
    %v1994 = vpack.c.b16 %v1928, %v1926
    %v1995 = vpack.c.b16 %v1931, %v1929
    %v1996 = vpack.c.b16 %v1932, %v1930
    %2061 = vmatprep.subr.bf16.mxu0 %v1934
    %2062 = vmatpush1.bf16.msra.mxu0 %v1933
    %2063 = vmatprep.subr.bf16.mxu0 %v1936
    %2064 = vmatpush1.bf16.msra.mxu0 %v1935
    %2065 = vmatprep.subr.bf16.mxu0 %v1938
    %2066 = vmatpush1.bf16.msra.mxu0 %v1937
    %2067 = vmatprep.subr.bf16.mxu0 %v1940
    %2068 = vmatpush1.bf16.msra.mxu0 %v1939
    %2069 = vmatprep.subr.bf16.mxu0 %v1942
    %2070 = vmatpush1.bf16.msra.mxu0 %v1941
    %2071 = vmatprep.subr.bf16.mxu0 %v1944
    %2072 = vmatpush1.bf16.msra.mxu0 %v1943
    %2073 = vmatprep.subr.bf16.mxu0 %v1946
    %2074 = vmatpush1.bf16.msra.mxu0 %v1945
    %2075 = vmatprep.subr.bf16.mxu0 %v1948
    %2076 = vmatpush1.bf16.msra.mxu0 %v1947
    %2077 = vmatprep.subr.bf16.mxu0 %v1950
    %2078 = vmatpush1.bf16.msra.mxu0 %v1949
    %2079 = vmatprep.subr.bf16.mxu0 %v1952
    %2080 = vmatpush1.bf16.msra.mxu0 %v1951
    %2081 = vmatprep.subr.bf16.mxu0 %v1954
    %2082 = vmatpush1.bf16.msra.mxu0 %v1953
    %2083 = vmatprep.subr.bf16.mxu0 %v1956
    %2084 = vmatpush1.bf16.msra.mxu0 %v1955
    %2085 = vmatprep.subr.bf16.mxu0 %v1958
    %2086 = vmatpush1.bf16.msra.mxu0 %v1957
    %2087 = vmatprep.subr.bf16.mxu0 %v1960
    %2088 = vmatpush1.bf16.msra.mxu0 %v1959
    %2089 = vmatprep.subr.bf16.mxu0 %v1962
    %2090 = vmatpush1.bf16.msra.mxu0 %v1961
    %2091 = vmatprep.subr.bf16.mxu0 %v1964
    %2092 = vmatpush1.bf16.msra.mxu0 %v1963
    %2093 = vmatprep.mubr.bf16.mxu0 %v1662
    %2094 = vmatmul.mubr.bf16.gmra.mrb[0].mxu0 %v1661
    %v2095 = vpop.f32.mrb[0].mxu0
    %v2096 = vadd.f32 %v1734, %v2095
    %v2097 = vpop.f32.mrb[0].mxu0
    %v2098 = vadd.f32 %v1738, %v2097
    %v2099 = vpop.f32.mrb[0].mxu0
    %v2100 = vadd.f32 %v1734, %v2099
    %v2101 = vpop.f32.mrb[0].mxu0
    %v2102 = vadd.f32 %v1738, %v2101
    %2103 = vdwg.mxu0
    %2104 = vmatprep.subr.bf16.mxu0 %v1966
    %2105 = vmatpush1.bf16.msra.mxu0 %v1965
    %2106 = vmatprep.subr.bf16.mxu0 %v1968
    %2107 = vmatpush1.bf16.msra.mxu0 %v1967
    %2108 = vmatprep.subr.bf16.mxu0 %v1970
    %2109 = vmatpush1.bf16.msra.mxu0 %v1969
    %2110 = vmatprep.subr.bf16.mxu0 %v1972
    %2111 = vmatpush1.bf16.msra.mxu0 %v1971
    %2112 = vmatprep.subr.bf16.mxu0 %v1974
    %2113 = vmatpush1.bf16.msra.mxu0 %v1973
    %2114 = vmatprep.subr.bf16.mxu0 %v1976
    %2115 = vmatpush1.bf16.msra.mxu0 %v1975
    %2116 = vmatprep.subr.bf16.mxu0 %v1978
    %2117 = vmatpush1.bf16.msra.mxu0 %v1977
    %2118 = vmatprep.subr.bf16.mxu0 %v1980
    %2119 = vmatpush1.bf16.msra.mxu0 %v1979
    %2120 = vmatprep.subr.bf16.mxu0 %v1982
    %2121 = vmatpush1.bf16.msra.mxu0 %v1981
    %2122 = vmatprep.subr.bf16.mxu0 %v1984
    %2123 = vmatpush1.bf16.msra.mxu0 %v1983
    %2124 = vmatprep.subr.bf16.mxu0 %v1986
    %2125 = vmatpush1.bf16.msra.mxu0 %v1985
    %2126 = vmatprep.subr.bf16.mxu0 %v1988
    %2127 = vmatpush1.bf16.msra.mxu0 %v1987
    %2128 = vmatprep.subr.bf16.mxu0 %v1990
    %2129 = vmatpush1.bf16.msra.mxu0 %v1989
    %2130 = vmatprep.subr.bf16.mxu0 %v1992
    %2131 = vmatpush1.bf16.msra.mxu0 %v1991
    %2132 = vmatprep.subr.bf16.mxu0 %v1994
    %2133 = vmatpush1.bf16.msra.mxu0 %v1993
    %2134 = vmatprep.subr.bf16.mxu0 %v1996
    %2135 = vmatpush1.bf16.msra.mxu0 %v1995
    %2136 = vmatprep.mubr.bf16.mxu0 %v1664
    %2137 = vmatmul.mubr.bf16.gmra.mrb[0].mxu0 %v1663
    %v2138 = vpop.f32.mrb[0].mxu0
    %v2139 = vadd.f32 %v2096, %v2138
    %v2140 = vpop.f32.mrb[0].mxu0
    %v2141 = vadd.f32 %v2098, %v2140
    %v2142 = vpop.f32.mrb[0].mxu0
    %v2143 = vadd.f32 %v2100, %v2142
    %v2144 = vpop.f32.mrb[0].mxu0
    %v2145 = vadd.f32 %v2102, %v2144
    %2146 = vdwg.mxu0
    %v2147 = vpack.c.bf16 %v2143, %v2139
    %v2148 = vpack.c.bf16 %v2145, %v2141
    %v2149 = vmul.bf16 %v2147, 1056980736
    %v2150 = vmul.bf16 %v2148, 1056980736
    %v2151 = vtanh.bf16.pop %v2149
    %v2152 = vtanh.bf16.pop %v2150
    %v2153 = vmul.bf16 %v2151, 1056980736
    %v2154 = vmul.bf16 %v2152, 1056980736
    %v2155 = vadd.bf16 %v2153, 1056980736
    %v2156 = vadd.bf16 %v2154, 1056980736
    %v2157 = vld [vmem:[#allocation4] sm:$0xf]
    %v2158 = vld [vmem:[#allocation4 + $0x4] sm:$0xf]
    %v2159 = vld [vmem:[#allocation4 + $0x8] sm:$0xf]
    %v2160 = vld [vmem:[#allocation4 + $0xc] sm:$0xf]
    %v2161 = vld [vmem:[#allocation4 + $0x10] sm:$0xf]
    %v2162 = vld [vmem:[#allocation4 + $0x14] sm:$0xf]
    %v2163 = vld [vmem:[#allocation4 + $0x18] sm:$0xf]
    %v2164 = vld [vmem:[#allocation4 + $0x1c] sm:$0xf]
    %v2165 = vld [vmem:[#allocation4 + $0x20] sm:$0xf]
    %v2166 = vld [vmem:[#allocation4 + $0x24] sm:$0xf]
    %v2167 = vld [vmem:[#allocation4 + $0x28] sm:$0xf]
    %v2168 = vld [vmem:[#allocation4 + $0x2c] sm:$0xf]
    %v2169 = vld [vmem:[#allocation4 + $0x30] sm:$0xf]
    %v2170 = vld [vmem:[#allocation4 + $0x34] sm:$0xf]
    %v2171 = vld [vmem:[#allocation4 + $0x38] sm:$0xf]
    %v2172 = vld [vmem:[#allocation4 + $0x3c] sm:$0xf]
    %v2173 = vld [vmem:[#allocation4 + $0x40] sm:$0xf]
    %v2174 = vld [vmem:[#allocation4 + $0x44] sm:$0xf]
    %v2175 = vld [vmem:[#allocation4 + $0x48] sm:$0xf]
    %v2176 = vld [vmem:[#allocation4 + $0x4c] sm:$0xf]
    %v2177 = vld [vmem:[#allocation4 + $0x50] sm:$0xf]
    %v2178 = vld [vmem:[#allocation4 + $0x54] sm:$0xf]
    %v2179 = vld [vmem:[#allocation4 + $0x58] sm:$0xf]
    %v2180 = vld [vmem:[#allocation4 + $0x5c] sm:$0xf]
    %v2181 = vld [vmem:[#allocation4 + $0x60] sm:$0xf]
    %v2182 = vld [vmem:[#allocation4 + $0x64] sm:$0xf]
    %v2183 = vld [vmem:[#allocation4 + $0x68] sm:$0xf]
    %v2184 = vld [vmem:[#allocation4 + $0x6c] sm:$0xf]
    %v2185 = vld [vmem:[#allocation4 + $0x70] sm:$0xf]
    %v2186 = vld [vmem:[#allocation4 + $0x74] sm:$0xf]
    %v2187 = vld [vmem:[#allocation4 + $0x78] sm:$0xf]
    %v2188 = vld [vmem:[#allocation4 + $0x7c] sm:$0xf]
    %v2189 = vld [vmem:[%s6] sm:$0x1]
    %v2191 = vlaneseq
    %v2192 = vshrl.u32 %v2191, 7
    %v2193 = vsub.s32 0, %v2192
    %v2194 = vrot.slane %v2189, %v2193
    %v2228 = vunpack.c.l.b16 %v2157
    %v2229 = vunpack.c.l.b16 %v2158
    %v2230 = vunpack.c.l.b16 %v2159
    %v2231 = vunpack.c.l.b16 %v2160
    %v2232 = vunpack.c.l.b16 %v2161
    %v2233 = vunpack.c.l.b16 %v2162
    %v2234 = vunpack.c.l.b16 %v2163
    %v2235 = vunpack.c.l.b16 %v2164
    %v2236 = vunpack.c.l.b16 %v2165
    %v2237 = vunpack.c.l.b16 %v2166
    %v2238 = vunpack.c.l.b16 %v2167
    %v2239 = vunpack.c.l.b16 %v2168
    %v2240 = vunpack.c.l.b16 %v2169
    %v2241 = vunpack.c.l.b16 %v2170
    %v2242 = vunpack.c.l.b16 %v2171
    %v2243 = vunpack.c.l.b16 %v2172
    %v2244 = vunpack.c.l.b16 %v2173
    %v2245 = vunpack.c.l.b16 %v2174
    %v2246 = vunpack.c.l.b16 %v2175
    %v2247 = vunpack.c.l.b16 %v2176
    %v2248 = vunpack.c.l.b16 %v2177
    %v2249 = vunpack.c.l.b16 %v2178
    %v2250 = vunpack.c.l.b16 %v2179
    %v2251 = vunpack.c.l.b16 %v2180
    %v2252 = vunpack.c.l.b16 %v2181
    %v2253 = vunpack.c.l.b16 %v2182
    %v2254 = vunpack.c.l.b16 %v2183
    %v2255 = vunpack.c.l.b16 %v2184
    %v2256 = vunpack.c.l.b16 %v2185
    %v2257 = vunpack.c.l.b16 %v2186
    %v2258 = vunpack.c.l.b16 %v2187
    %v2259 = vunpack.c.l.b16 %v2188
    %v2260 = vpack.c.b16 %v2229, %v2228
    %v2261 = vpack.c.b16 %v2231, %v2230
    %v2262 = vpack.c.b16 %v2233, %v2232
    %v2263 = vpack.c.b16 %v2235, %v2234
    %v2264 = vpack.c.b16 %v2237, %v2236
    %v2265 = vpack.c.b16 %v2239, %v2238
    %v2266 = vpack.c.b16 %v2241, %v2240
    %v2267 = vpack.c.b16 %v2243, %v2242
    %v2268 = vpack.c.b16 %v2245, %v2244
    %v2269 = vpack.c.b16 %v2247, %v2246
    %v2270 = vpack.c.b16 %v2249, %v2248
    %v2271 = vpack.c.b16 %v2251, %v2250
    %v2272 = vpack.c.b16 %v2253, %v2252
    %v2273 = vpack.c.b16 %v2255, %v2254
    %v2274 = vpack.c.b16 %v2257, %v2256
    %v2275 = vpack.c.b16 %v2259, %v2258
    %2292 = vmatprep.subr.bf16.mxu0 0
    %2293 = vmatpush1.bf16.msra.mxu0 %v2260
    %2294 = vmatprep.subr.bf16.mxu0 0
    %2295 = vmatpush1.bf16.msra.mxu0 %v2261
    %2296 = vmatprep.subr.bf16.mxu0 0
    %2297 = vmatpush1.bf16.msra.mxu0 %v2262
    %2298 = vmatprep.subr.bf16.mxu0 0
    %2299 = vmatpush1.bf16.msra.mxu0 %v2263
    %2300 = vmatprep.subr.bf16.mxu0 0
    %2301 = vmatpush1.bf16.msra.mxu0 %v2264
    %2302 = vmatprep.subr.bf16.mxu0 0
    %2303 = vmatpush1.bf16.msra.mxu0 %v2265
    %2304 = vmatprep.subr.bf16.mxu0 0
    %2305 = vmatpush1.bf16.msra.mxu0 %v2266
    %2306 = vmatprep.subr.bf16.mxu0 0
    %2307 = vmatpush1.bf16.msra.mxu0 %v2267
    %2308 = vmatprep.subr.bf16.mxu0 0
    %2309 = vmatpush1.bf16.msra.mxu0 %v2268
    %2310 = vmatprep.subr.bf16.mxu0 0
    %2311 = vmatpush1.bf16.msra.mxu0 %v2269
    %2312 = vmatprep.subr.bf16.mxu0 0
    %2313 = vmatpush1.bf16.msra.mxu0 %v2270
    %2314 = vmatprep.subr.bf16.mxu0 0
    %2315 = vmatpush1.bf16.msra.mxu0 %v2271
    %2316 = vmatprep.subr.bf16.mxu0 0
    %2317 = vmatpush1.bf16.msra.mxu0 %v2272
    %2318 = vmatprep.subr.bf16.mxu0 0
    %2319 = vmatpush1.bf16.msra.mxu0 %v2273
    %2320 = vmatprep.subr.bf16.mxu0 0
    %2321 = vmatpush1.bf16.msra.mxu0 %v2274
    %2322 = vmatprep.subr.bf16.mxu0 0
    %2323 = vmatpush1.bf16.msra.mxu0 %v2275
    %2324 = vmatprep.mubr.bf16.mxu0 %v2156
    %2325 = vmatmul.mubr.bf16.gmra.mrb[0].mxu0 %v2155
    %v2326 = vpop.f32.mrb[0].mxu0
    %v2327 = vadd.f32 %v2194, %v2326
    %v2328 = vpop.f32.mrb[0].mxu0
    %v2329 = vpop.f32.mrb[0].mxu0
    %v2330 = vadd.f32 %v2194, %v2329
    %v2331 = vpop.f32.mrb[0].mxu0
    %2332 = vdwg.mxu0
    %2333 = vmax.xlane.f32.xlu0 %v2327
    %v2334 = vpop.xlane.xlu0 %2333
    %2335 = vmax.xlane.f32.xlu0 %v2330
    %v2336 = vpop.xlane.xlu0 %2335
    %v2337 = vsub.f32 %v2327, %v2334
    %v2338 = vsub.f32 %v2330, %v2336
    %v2339 = vmul.f32 %v2337, 1.442695
    %v2340 = vpow.pop %v2339
    %v2341 = vmul.f32 %v2338, 1.442695
    %v2342 = vpow.pop %v2341
    %2343 = vadd.xlane.f32.xlu0 %v2340
    %v2344 = vpop.xlane.xlu0 %2343
    %2345 = vadd.xlane.f32.xlu0 %v2342
    %v2346 = vpop.xlane.xlu0 %2345
    %v2347 = vlog2.pop %v2344
    %v2348 = vmul.f32 %v2347, 0.6931472
    %v2349 = vlog2.pop %v2346
    %v2350 = vmul.f32 %v2349, 0.6931472
    %v2351 = vsub.f32 %v2337, %v2348
    %v2352 = vsub.f32 %v2338, %v2350
    %2353 = vst [vmem:[%s7] sm:$0xff] %v2351
    %2354 = vst [vmem:[%s7 + $0x8] sm:$0xff] %v2352
    // Predicated region
    $region38: #{net_forward.1} parent=1 // pred_check
      _
    $region39: #{net_forward.1} parent=1 // pred_check_branch
      %2356 = sbr.rel (0) target = $region41
    $region40: #{net_forward.1} parent=1 // pred_region
      _
    $region41: #{net_forward.1} parent=1 // pred_fallthru
      _
    // Predicated region
    $region42: #{net_forward.1} parent=1 // pred_check
      _
    $region43: #{net_forward.1} parent=1 // pred_check_branch
      %2358 = sbr.rel (0) target = $region45
    $region44: #{net_forward.1} parent=1 // pred_region
      _
    $region45: #{net_forward.1} parent=1 // pred_fallthru
      _
    %2359 = vsyncpa [#allocation3], 1
    %2360 = vsyncpa [#allocation5], 1

</llo_original>
